<compile_context>
chip_gen: v7x
topology: tpu7x:2x2x1
jax: 0.10.0
libtpu: 0.0.40
codegen_flags: <defaults>
</compile_context>

<pallas_src>
import functools

import jax
import jax.numpy as jnp
from jax.experimental import pallas as pl
from jax.experimental.pallas import tpu as pltpu


def _tcn_fused_kernel(*refs, layer_meta, K, L):
    """All TemporalBlocks fused; one batch element per grid step.

    refs = [x_ref, <per-layer params...>, out_ref]
      x_ref   : (L, C0)        input for this batch element (batch dim squeezed)
      per layer i (in order): w1 (K, Cin, Cout), b1 (1, Cout),
                              w2 (K, Cout, Cout), b2 (1, Cout),
                              [wd (Cin, Cout), bd (1, Cout)]  only if Cin != Cout
      out_ref : (L, C_last)
    layer_meta: tuple of (dilation, has_downsample) per layer (static).
    """
    x_ref = refs[0]
    out_ref = refs[-1]
    param_refs = refs[1:-1]

    # Row (time) index along the sublane axis, used to zero the causal-pad region.
    row = jax.lax.broadcasted_iota(jnp.int32, (L, 1), 0)

    def causal_dilated_conv(h, w_ref, b_ref, dilation):
        """Causal dilated conv == sum over K shifted (L,Cin)x(Cin,Cout) matmuls.

        The causal left-zero-padding is done in-register: pltpu.roll along the
        sublane axis (XLU slot) + a VPU mask of the wrapped rows. No HBM pad copy,
        no VMEM staging buffer, no extra stores/reloads.
        """
        cout = w_ref.shape[-1]
        acc = jnp.zeros((L, cout), jnp.float32)
        for j in range(K):
            s = (K - 1 - j) * dilation          # causal shift for tap j
            if s >= L:                          # this tap only ever sees zero padding
                continue
            if s == 0:
                xs = h
            else:
                # shifted[t] = h[t - s] for t >= s, else 0
                xs = jnp.where(row >= s,
                               pltpu.roll(h, shift=s, axis=0),
                               jnp.zeros_like(h))
            acc = acc + jnp.dot(xs, w_ref[j],
                                preferred_element_type=jnp.float32)
        return acc + b_ref[...]

    h = x_ref[...].astype(jnp.float32)          # stays VMEM/register resident
    idx = 0
    for dilation, has_down in layer_meta:
        w1 = param_refs[idx]
        b1 = param_refs[idx + 1]
        w2 = param_refs[idx + 2]
        b2 = param_refs[idx + 3]
        idx += 4

        # conv1 -> chomp -> ReLU   (dropout = identity at inference)
        h1 = jnp.maximum(causal_dilated_conv(h, w1, b1, dilation), 0.0)
        # conv2 -> chomp -> ReLU
        h2 = jnp.maximum(causal_dilated_conv(h1, w2, b2, dilation), 0.0)

        if has_down:                            # 1x1 conv residual (Cin != Cout)
            wd = param_refs[idx]
            bd = param_refs[idx + 1]
            idx += 2
            res = jnp.dot(h, wd[...],
                          preferred_element_type=jnp.float32) + bd[...]
        else:                                   # identity residual: no matmul, no DMA
            res = h

        h = jnp.maximum(h2 + res, 0.0)          # block output == next block input

    out_ref[...] = h.astype(out_ref.dtype)


def temporal_conv_net(x_ncl, params, kernel_size=2):
    """Forward pass of TemporalConvNet (inference).

    x_ncl: (B, C_in, L) in PyTorch's NCL layout.
    returns: (B, num_channels[-1], L) in NCL layout.
    """
    B, C0, L = x_ncl.shape
    C_last = params[-1]["w2"].shape[-1]
    x = jnp.transpose(x_ncl, (0, 2, 1))         # (B, L, C): time=sublanes, chan=lanes

    inputs = [x]
    in_specs = [pl.BlockSpec((None, L, C0), lambda b: (b, 0, 0))]
    layer_meta = []
    flops = 0
    bytes_accessed = 4 * (x.size + B * L * C_last)

    for p in params:
        K, cin, cout = p["w1"].shape
        has_down = p["wd"] is not None
        layer_meta.append((int(p["dilation"]), has_down))

        layer_arrays = [p["w1"], p["b1"], p["w2"], p["b2"]]
        in_specs += [
            pl.BlockSpec((K, cin, cout), lambda b: (0, 0, 0)),
            pl.BlockSpec((1, cout), lambda b: (0, 0)),
            pl.BlockSpec((K, cout, cout), lambda b: (0, 0, 0)),
            pl.BlockSpec((1, cout), lambda b: (0, 0)),
        ]
        if has_down:
            layer_arrays += [p["wd"], p["bd"]]
            in_specs += [
                pl.BlockSpec((cin, cout), lambda b: (0, 0)),
                pl.BlockSpec((1, cout), lambda b: (0, 0)),
            ]
        inputs += layer_arrays

        flops += 2 * B * L * (K * cin * cout + K * cout * cout
                              + (cin * cout if has_down else 0))
        bytes_accessed += 4 * sum(int(a.size) for a in layer_arrays)

    kernel = functools.partial(_tcn_fused_kernel,
                               layer_meta=tuple(layer_meta),
                               K=kernel_size, L=L)

    y = pl.pallas_call(
        kernel,
        out_shape=jax.ShapeDtypeStruct((B, L, C_last), jnp.float32),
        grid=(B,),
        in_specs=in_specs,
        out_specs=pl.BlockSpec((None, L, C_last), lambda b: (b, 0, 0)),
        compiler_params=pltpu.CompilerParams(
            dimension_semantics=("parallel",)),
        cost_estimate=pl.CostEstimate(flops=int(flops), transcendentals=0,
                                      bytes_accessed=int(bytes_accessed)),
    )(*inputs)
    return jnp.transpose(y, (0, 2, 1))          # back to PyTorch NCL


def init_tcn_params(key, num_inputs, num_channels, kernel_size=2):
    """Deterministic synthetic parameters matching TemporalConvNet.__init__ shapes.

    Conv weights ~ N(0, 0.01) as in init_weights(); weights stored (K, Cin, Cout)
    (PyTorch stores (Cout, Cin, K)).  wd/bd are None when Cin == Cout
    (downsample=None in PyTorch), and the kernel skips the residual matmul.
    """
    params = []
    for i, out_ch in enumerate(num_channels):
        in_ch = num_inputs if i == 0 else num_channels[i - 1]
        key, k1, k2, k3, k4, k5, k6 = jax.random.split(key, 7)
        w1 = 0.01 * jax.random.normal(k1, (kernel_size, in_ch, out_ch), jnp.float32)
        b1 = 0.01 * jax.random.normal(k2, (1, out_ch), jnp.float32)
        w2 = 0.01 * jax.random.normal(k3, (kernel_size, out_ch, out_ch), jnp.float32)
        b2 = 0.01 * jax.random.normal(k4, (1, out_ch), jnp.float32)
        if in_ch != out_ch:
            wd = 0.01 * jax.random.normal(k5, (in_ch, out_ch), jnp.float32)
            bd = 0.01 * jax.random.normal(k6, (1, out_ch), jnp.float32)
        else:
            wd, bd = None, None
        params.append(dict(w1=w1, b1=b1, w2=w2, b2=b2, wd=wd, bd=bd,
                           dilation=2 ** i))
    return params


def _reference_tcn(x_ncl, params, kernel_size=2):
    """Pure-JAX reference mirroring PyTorch Conv1d(pad) + Chomp1d + ReLU exactly."""
    x = x_ncl
    for p in params:
        d = int(p["dilation"])
        pad = (kernel_size - 1) * d

        def conv(inp, w_kio, b):
            w_oik = jnp.transpose(w_kio, (2, 1, 0))     # (Cout, Cin, K) a la PyTorch
            y = jax.lax.conv_general_dilated(
                inp, w_oik, window_strides=(1,), padding=[(pad, pad)],
                rhs_dilation=(d,), dimension_numbers=("NCH", "OIH", "NCH"),
                precision=jax.lax.Precision.HIGHEST)
            y = y[:, :, : y.shape[2] - pad]             # Chomp1d
            return y + b[0][None, :, None]

        h = jnp.maximum(conv(x, p["w1"], p["b1"]), 0.0)
        h = jnp.maximum(conv(h, p["w2"], p["b2"]), 0.0)
        if p["wd"] is None:
            res = x
        else:
            res = jnp.einsum("io,bil->bol", p["wd"], x,
                             precision=jax.lax.Precision.HIGHEST) \
                  + p["bd"][0][None, :, None]
        x = jnp.maximum(h + res, 0.0)
    return x


if __name__ == "__main__":
    key = jax.random.PRNGKey(0)
    B, C_in, L = 2, 4, 16
    num_channels = [8, 16, 16]                  # last block exercises identity residual
    kernel_size = 2

    kx, kp = jax.random.split(key)
    x = jax.random.normal(kx, (B, C_in, L), jnp.float32)     # PyTorch NCL input
    params = init_tcn_params(kp, C_in, num_channels, kernel_size)

    y = temporal_conv_net(x, params, kernel_size=kernel_size)
    jax.block_until_ready(y)
    assert y.shape == (B, num_channels[-1], L)
    assert bool(jnp.all(y >= 0.0))              # final ReLU

    y_ref = _reference_tcn(x, params, kernel_size=kernel_size)
    assert bool(jnp.allclose(y, y_ref, rtol=1e-3, atol=1e-4)), \
        float(jnp.max(jnp.abs(y - y_ref)))

    print("KERNEL_OK")
</pallas_src>

<mosaic_0001>
module attributes {stable_mosaic.version = 11 : i64} {
  func.func @_tcn_fused_kernel(%arg0: i32, %arg1: memref<1x16x4xf32, #tpu.memory_space<vmem>>, %arg2: memref<2x4x8xf32, #tpu.memory_space<vmem>>, %arg3: memref<1x8xf32, #tpu.memory_space<vmem>>, %arg4: memref<2x8x8xf32, #tpu.memory_space<vmem>>, %arg5: memref<1x8xf32, #tpu.memory_space<vmem>>, %arg6: memref<4x8xf32, #tpu.memory_space<vmem>>, %arg7: memref<1x8xf32, #tpu.memory_space<vmem>>, %arg8: memref<2x8x16xf32, #tpu.memory_space<vmem>>, %arg9: memref<1x16xf32, #tpu.memory_space<vmem>>, %arg10: memref<2x16x16xf32, #tpu.memory_space<vmem>>, %arg11: memref<1x16xf32, #tpu.memory_space<vmem>>, %arg12: memref<8x16xf32, #tpu.memory_space<vmem>>, %arg13: memref<1x16xf32, #tpu.memory_space<vmem>>, %arg14: memref<2x16x16xf32, #tpu.memory_space<vmem>>, %arg15: memref<1x16xf32, #tpu.memory_space<vmem>>, %arg16: memref<2x16x16xf32, #tpu.memory_space<vmem>>, %arg17: memref<1x16xf32, #tpu.memory_space<vmem>>, %arg18: memref<1x16x16xf32, #tpu.memory_space<vmem>>) attributes {dimension_semantics = [#tpu.dimension_semantics<parallel>], iteration_bounds = array<i64: 2>, scalar_prefetch = 0 : i64, scratch_operands = 0 : i64, tpu.core_type = #tpu.core_type<tc>, window_params = [{transform_indices = @transform_0, window_bounds = array<i64: 1, 16, 4>}, {pipeline_mode = #tpu.pipeline_mode<synchronous>, transform_indices = @transform_1, window_bounds = array<i64: 2, 4, 8>}, {pipeline_mode = #tpu.pipeline_mode<synchronous>, transform_indices = @transform_2, window_bounds = array<i64: 1, 8>}, {pipeline_mode = #tpu.pipeline_mode<synchronous>, transform_indices = @transform_3, window_bounds = array<i64: 2, 8, 8>}, {pipeline_mode = #tpu.pipeline_mode<synchronous>, transform_indices = @transform_4, window_bounds = array<i64: 1, 8>}, {pipeline_mode = #tpu.pipeline_mode<synchronous>, transform_indices = @transform_5, window_bounds = array<i64: 4, 8>}, {pipeline_mode = #tpu.pipeline_mode<synchronous>, transform_indices = @transform_6, window_bounds = array<i64: 1, 8>}, {pipeline_mode = #tpu.pipeline_mode<synchronous>, transform_indices = @transform_7, window_bounds = array<i64: 2, 8, 16>}, {pipeline_mode = #tpu.pipeline_mode<synchronous>, transform_indices = @transform_8, window_bounds = array<i64: 1, 16>}, {pipeline_mode = #tpu.pipeline_mode<synchronous>, transform_indices = @transform_9, window_bounds = array<i64: 2, 16, 16>}, {pipeline_mode = #tpu.pipeline_mode<synchronous>, transform_indices = @transform_10, window_bounds = array<i64: 1, 16>}, {pipeline_mode = #tpu.pipeline_mode<synchronous>, transform_indices = @transform_11, window_bounds = array<i64: 8, 16>}, {pipeline_mode = #tpu.pipeline_mode<synchronous>, transform_indices = @transform_12, window_bounds = array<i64: 1, 16>}, {pipeline_mode = #tpu.pipeline_mode<synchronous>, transform_indices = @transform_13, window_bounds = array<i64: 2, 16, 16>}, {pipeline_mode = #tpu.pipeline_mode<synchronous>, transform_indices = @transform_14, window_bounds = array<i64: 1, 16>}, {pipeline_mode = #tpu.pipeline_mode<synchronous>, transform_indices = @transform_15, window_bounds = array<i64: 2, 16, 16>}, {pipeline_mode = #tpu.pipeline_mode<synchronous>, transform_indices = @transform_16, window_bounds = array<i64: 1, 16>}, {transform_indices = @transform_17, window_bounds = array<i64: 1, 16, 16>}]} {
    %0 = tpu.iota {dimensions = array<i32: 0>} : vector<16x1xi32>
    %c0 = arith.constant 0 : index
    %c0_0 = arith.constant 0 : index
    %c0_1 = arith.constant 0 : index
    %1 = vector.load %arg1[%c0, %c0_0, %c0_1] : memref<1x16x4xf32, #tpu.memory_space<vmem>>, vector<1x16x4xf32>
    %2 = vector.shape_cast %1 : vector<1x16x4xf32> to vector<16x4xf32>
    %cst = arith.constant 0.000000e+00 : f32
    %3 = vector.broadcast %cst : f32 to vector<16x8xf32>
    %c1_i32 = arith.constant 1 : i32
    %4 = vector.broadcast %c1_i32 : i32 to vector<16x1xi32>
    %5 = arith.cmpi sge, %0, %4 : vector<16x1xi32>
    %c1_i32_2 = arith.constant 1 : i32
    %6 = tpu.dynamic_rotate %2 by %c1_i32_2 dim 0 : vector<16x4xf32>, i32 -> vector<16x4xf32>
    %cst_3 = arith.constant 0.000000e+00 : f32
    %7 = vector.broadcast %cst_3 : f32 to vector<16x4xf32>
    %8 = vector.shape_cast %5 : vector<16x1xi1> to vector<16x1xi1>
    %9 = vector.broadcast %8 : vector<16x1xi1> to vector<16x4xi1>
    %10 = arith.select %9, %6, %7 : vector<16x4xi1>, vector<16x4xf32>
    %c0_4 = arith.constant 0 : index
    %c0_5 = arith.constant 0 : index
    %c0_6 = arith.constant 0 : index
    %11 = vector.load %arg2[%c0_4, %c0_5, %c0_6] : memref<2x4x8xf32, #tpu.memory_space<vmem>>, vector<1x4x8xf32>
    %12 = vector.shape_cast %11 : vector<1x4x8xf32> to vector<4x8xf32>
    %cst_7 = arith.constant dense<0.000000e+00> : vector<16x8xf32>
    %13 = tpu.matmul %10, %12, %cst_7 {dimension_numbers = #tpu.dot_dimension_numbers<[1], [0], [0], [1], [0, 0, 1, 1], [], []>} : vector<16x4xf32>, vector<4x8xf32>, vector<16x8xf32> -> vector<16x8xf32>
    %14 = arith.addf %3, %13 : vector<16x8xf32>
    %c1 = arith.constant 1 : index
    %c0_8 = arith.constant 0 : index
    %c0_9 = arith.constant 0 : index
    %15 = vector.load %arg2[%c1, %c0_8, %c0_9] : memref<2x4x8xf32, #tpu.memory_space<vmem>>, vector<1x4x8xf32>
    %16 = vector.shape_cast %15 : vector<1x4x8xf32> to vector<4x8xf32>
    %cst_10 = arith.constant dense<0.000000e+00> : vector<16x8xf32>
    %17 = tpu.matmul %2, %16, %cst_10 {dimension_numbers = #tpu.dot_dimension_numbers<[1], [0], [0], [1], [0, 0, 1, 1], [], []>} : vector<16x4xf32>, vector<4x8xf32>, vector<16x8xf32> -> vector<16x8xf32>
    %18 = arith.addf %14, %17 : vector<16x8xf32>
    %c0_11 = arith.constant 0 : index
    %c0_12 = arith.constant 0 : index
    %19 = vector.load %arg3[%c0_11, %c0_12] : memref<1x8xf32, #tpu.memory_space<vmem>>, vector<1x8xf32>
    %20 = vector.broadcast %19 : vector<1x8xf32> to vector<16x8xf32>
    %21 = arith.addf %18, %20 : vector<16x8xf32>
    %cst_13 = arith.constant 0.000000e+00 : f32
    %22 = vector.broadcast %cst_13 : f32 to vector<16x8xf32>
    %23 = arith.maximumf %21, %22 : vector<16x8xf32>
    %cst_14 = arith.constant 0.000000e+00 : f32
    %24 = vector.broadcast %cst_14 : f32 to vector<16x8xf32>
    %c1_i32_15 = arith.constant 1 : i32
    %25 = vector.broadcast %c1_i32_15 : i32 to vector<16x1xi32>
    %26 = arith.cmpi sge, %0, %25 : vector<16x1xi32>
    %c1_i32_16 = arith.constant 1 : i32
    %27 = tpu.dynamic_rotate %23 by %c1_i32_16 dim 0 : vector<16x8xf32>, i32 -> vector<16x8xf32>
    %cst_17 = arith.constant 0.000000e+00 : f32
    %28 = vector.broadcast %cst_17 : f32 to vector<16x8xf32>
    %29 = vector.shape_cast %26 : vector<16x1xi1> to vector<16x1xi1>
    %30 = vector.broadcast %29 : vector<16x1xi1> to vector<16x8xi1>
    %31 = arith.select %30, %27, %28 : vector<16x8xi1>, vector<16x8xf32>
    %c0_18 = arith.constant 0 : index
    %c0_19 = arith.constant 0 : index
    %c0_20 = arith.constant 0 : index
    %32 = vector.load %arg4[%c0_18, %c0_19, %c0_20] : memref<2x8x8xf32, #tpu.memory_space<vmem>>, vector<1x8x8xf32>
    %33 = vector.shape_cast %32 : vector<1x8x8xf32> to vector<8x8xf32>
    %cst_21 = arith.constant dense<0.000000e+00> : vector<16x8xf32>
    %34 = tpu.matmul %31, %33, %cst_21 {dimension_numbers = #tpu.dot_dimension_numbers<[1], [0], [0], [1], [0, 0, 1, 1], [], []>} : vector<16x8xf32>, vector<8x8xf32>, vector<16x8xf32> -> vector<16x8xf32>
    %35 = arith.addf %24, %34 : vector<16x8xf32>
    %c1_22 = arith.constant 1 : index
    %c0_23 = arith.constant 0 : index
    %c0_24 = arith.constant 0 : index
    %36 = vector.load %arg4[%c1_22, %c0_23, %c0_24] : memref<2x8x8xf32, #tpu.memory_space<vmem>>, vector<1x8x8xf32>
    %37 = vector.shape_cast %36 : vector<1x8x8xf32> to vector<8x8xf32>
    %cst_25 = arith.constant dense<0.000000e+00> : vector<16x8xf32>
    %38 = tpu.matmul %23, %37, %cst_25 {dimension_numbers = #tpu.dot_dimension_numbers<[1], [0], [0], [1], [0, 0, 1, 1], [], []>} : vector<16x8xf32>, vector<8x8xf32>, vector<16x8xf32> -> vector<16x8xf32>
    %39 = arith.addf %35, %38 : vector<16x8xf32>
    %c0_26 = arith.constant 0 : index
    %c0_27 = arith.constant 0 : index
    %40 = vector.load %arg5[%c0_26, %c0_27] : memref<1x8xf32, #tpu.memory_space<vmem>>, vector<1x8xf32>
    %41 = vector.broadcast %40 : vector<1x8xf32> to vector<16x8xf32>
    %42 = arith.addf %39, %41 : vector<16x8xf32>
    %cst_28 = arith.constant 0.000000e+00 : f32
    %43 = vector.broadcast %cst_28 : f32 to vector<16x8xf32>
    %44 = arith.maximumf %42, %43 : vector<16x8xf32>
    %c0_29 = arith.constant 0 : index
    %c0_30 = arith.constant 0 : index
    %45 = vector.load %arg6[%c0_29, %c0_30] : memref<4x8xf32, #tpu.memory_space<vmem>>, vector<4x8xf32>
    %cst_31 = arith.constant dense<0.000000e+00> : vector<16x8xf32>
    %46 = tpu.matmul %2, %45, %cst_31 {dimension_numbers = #tpu.dot_dimension_numbers<[1], [0], [0], [1], [0, 0, 1, 1], [], []>} : vector<16x4xf32>, vector<4x8xf32>, vector<16x8xf32> -> vector<16x8xf32>
    %c0_32 = arith.constant 0 : index
    %c0_33 = arith.constant 0 : index
    %47 = vector.load %arg7[%c0_32, %c0_33] : memref<1x8xf32, #tpu.memory_space<vmem>>, vector<1x8xf32>
    %48 = vector.broadcast %47 : vector<1x8xf32> to vector<16x8xf32>
    %49 = arith.addf %46, %48 : vector<16x8xf32>
    %50 = arith.addf %44, %49 : vector<16x8xf32>
    %cst_34 = arith.constant 0.000000e+00 : f32
    %51 = vector.broadcast %cst_34 : f32 to vector<16x8xf32>
    %52 = arith.maximumf %50, %51 : vector<16x8xf32>
    %cst_35 = arith.constant 0.000000e+00 : f32
    %53 = vector.broadcast %cst_35 : f32 to vector<16x16xf32>
    %c2_i32 = arith.constant 2 : i32
    %54 = vector.broadcast %c2_i32 : i32 to vector<16x1xi32>
    %55 = arith.cmpi sge, %0, %54 : vector<16x1xi32>
    %c2_i32_36 = arith.constant 2 : i32
    %56 = tpu.dynamic_rotate %52 by %c2_i32_36 dim 0 : vector<16x8xf32>, i32 -> vector<16x8xf32>
    %cst_37 = arith.constant 0.000000e+00 : f32
    %57 = vector.broadcast %cst_37 : f32 to vector<16x8xf32>
    %58 = vector.shape_cast %55 : vector<16x1xi1> to vector<16x1xi1>
    %59 = vector.broadcast %58 : vector<16x1xi1> to vector<16x8xi1>
    %60 = arith.select %59, %56, %57 : vector<16x8xi1>, vector<16x8xf32>
    %c0_38 = arith.constant 0 : index
    %c0_39 = arith.constant 0 : index
    %c0_40 = arith.constant 0 : index
    %61 = vector.load %arg8[%c0_38, %c0_39, %c0_40] : memref<2x8x16xf32, #tpu.memory_space<vmem>>, vector<1x8x16xf32>
    %62 = vector.shape_cast %61 : vector<1x8x16xf32> to vector<8x16xf32>
    %cst_41 = arith.constant dense<0.000000e+00> : vector<16x16xf32>
    %63 = tpu.matmul %60, %62, %cst_41 {dimension_numbers = #tpu.dot_dimension_numbers<[1], [0], [0], [1], [0, 0, 1, 1], [], []>} : vector<16x8xf32>, vector<8x16xf32>, vector<16x16xf32> -> vector<16x16xf32>
    %64 = arith.addf %53, %63 : vector<16x16xf32>
    %c1_42 = arith.constant 1 : index
    %c0_43 = arith.constant 0 : index
    %c0_44 = arith.constant 0 : index
    %65 = vector.load %arg8[%c1_42, %c0_43, %c0_44] : memref<2x8x16xf32, #tpu.memory_space<vmem>>, vector<1x8x16xf32>
    %66 = vector.shape_cast %65 : vector<1x8x16xf32> to vector<8x16xf32>
    %cst_45 = arith.constant dense<0.000000e+00> : vector<16x16xf32>
    %67 = tpu.matmul %52, %66, %cst_45 {dimension_numbers = #tpu.dot_dimension_numbers<[1], [0], [0], [1], [0, 0, 1, 1], [], []>} : vector<16x8xf32>, vector<8x16xf32>, vector<16x16xf32> -> vector<16x16xf32>
    %68 = arith.addf %64, %67 : vector<16x16xf32>
    %c0_46 = arith.constant 0 : index
    %c0_47 = arith.constant 0 : index
    %69 = vector.load %arg9[%c0_46, %c0_47] : memref<1x16xf32, #tpu.memory_space<vmem>>, vector<1x16xf32>
    %70 = vector.broadcast %69 : vector<1x16xf32> to vector<16x16xf32>
    %71 = arith.addf %68, %70 : vector<16x16xf32>
    %cst_48 = arith.constant 0.000000e+00 : f32
    %72 = vector.broadcast %cst_48 : f32 to vector<16x16xf32>
    %73 = arith.maximumf %71, %72 : vector<16x16xf32>
    %cst_49 = arith.constant 0.000000e+00 : f32
    %74 = vector.broadcast %cst_49 : f32 to vector<16x16xf32>
    %c2_i32_50 = arith.constant 2 : i32
    %75 = vector.broadcast %c2_i32_50 : i32 to vector<16x1xi32>
    %76 = arith.cmpi sge, %0, %75 : vector<16x1xi32>
    %c2_i32_51 = arith.constant 2 : i32
    %77 = tpu.dynamic_rotate %73 by %c2_i32_51 dim 0 : vector<16x16xf32>, i32 -> vector<16x16xf32>
    %cst_52 = arith.constant 0.000000e+00 : f32
    %78 = vector.broadcast %cst_52 : f32 to vector<16x16xf32>
    %79 = vector.shape_cast %76 : vector<16x1xi1> to vector<16x1xi1>
    %80 = vector.broadcast %79 : vector<16x1xi1> to vector<16x16xi1>
    %81 = arith.select %80, %77, %78 : vector<16x16xi1>, vector<16x16xf32>
    %c0_53 = arith.constant 0 : index
    %c0_54 = arith.constant 0 : index
    %c0_55 = arith.constant 0 : index
    %82 = vector.load %arg10[%c0_53, %c0_54, %c0_55] : memref<2x16x16xf32, #tpu.memory_space<vmem>>, vector<1x16x16xf32>
    %83 = vector.shape_cast %82 : vector<1x16x16xf32> to vector<16x16xf32>
    %cst_56 = arith.constant dense<0.000000e+00> : vector<16x16xf32>
    %84 = tpu.matmul %81, %83, %cst_56 {dimension_numbers = #tpu.dot_dimension_numbers<[1], [0], [0], [1], [0, 0, 1, 1], [], []>} : vector<16x16xf32>, vector<16x16xf32>, vector<16x16xf32> -> vector<16x16xf32>
    %85 = arith.addf %74, %84 : vector<16x16xf32>
    %c1_57 = arith.constant 1 : index
    %c0_58 = arith.constant 0 : index
    %c0_59 = arith.constant 0 : index
    %86 = vector.load %arg10[%c1_57, %c0_58, %c0_59] : memref<2x16x16xf32, #tpu.memory_space<vmem>>, vector<1x16x16xf32>
    %87 = vector.shape_cast %86 : vector<1x16x16xf32> to vector<16x16xf32>
    %cst_60 = arith.constant dense<0.000000e+00> : vector<16x16xf32>
    %88 = tpu.matmul %73, %87, %cst_60 {dimension_numbers = #tpu.dot_dimension_numbers<[1], [0], [0], [1], [0, 0, 1, 1], [], []>} : vector<16x16xf32>, vector<16x16xf32>, vector<16x16xf32> -> vector<16x16xf32>
    %89 = arith.addf %85, %88 : vector<16x16xf32>
    %c0_61 = arith.constant 0 : index
    %c0_62 = arith.constant 0 : index
    %90 = vector.load %arg11[%c0_61, %c0_62] : memref<1x16xf32, #tpu.memory_space<vmem>>, vector<1x16xf32>
    %91 = vector.broadcast %90 : vector<1x16xf32> to vector<16x16xf32>
    %92 = arith.addf %89, %91 : vector<16x16xf32>
    %cst_63 = arith.constant 0.000000e+00 : f32
    %93 = vector.broadcast %cst_63 : f32 to vector<16x16xf32>
    %94 = arith.maximumf %92, %93 : vector<16x16xf32>
    %c0_64 = arith.constant 0 : index
    %c0_65 = arith.constant 0 : index
    %95 = vector.load %arg12[%c0_64, %c0_65] : memref<8x16xf32, #tpu.memory_space<vmem>>, vector<8x16xf32>
    %cst_66 = arith.constant dense<0.000000e+00> : vector<16x16xf32>
    %96 = tpu.matmul %52, %95, %cst_66 {dimension_numbers = #tpu.dot_dimension_numbers<[1], [0], [0], [1], [0, 0, 1, 1], [], []>} : vector<16x8xf32>, vector<8x16xf32>, vector<16x16xf32> -> vector<16x16xf32>
    %c0_67 = arith.constant 0 : index
    %c0_68 = arith.constant 0 : index
    %97 = vector.load %arg13[%c0_67, %c0_68] : memref<1x16xf32, #tpu.memory_space<vmem>>, vector<1x16xf32>
    %98 = vector.broadcast %97 : vector<1x16xf32> to vector<16x16xf32>
    %99 = arith.addf %96, %98 : vector<16x16xf32>
    %100 = arith.addf %94, %99 : vector<16x16xf32>
    %cst_69 = arith.constant 0.000000e+00 : f32
    %101 = vector.broadcast %cst_69 : f32 to vector<16x16xf32>
    %102 = arith.maximumf %100, %101 : vector<16x16xf32>
    %cst_70 = arith.constant 0.000000e+00 : f32
    %103 = vector.broadcast %cst_70 : f32 to vector<16x16xf32>
    %c4_i32 = arith.constant 4 : i32
    %104 = vector.broadcast %c4_i32 : i32 to vector<16x1xi32>
    %105 = arith.cmpi sge, %0, %104 : vector<16x1xi32>
    %c4_i32_71 = arith.constant 4 : i32
    %106 = tpu.dynamic_rotate %102 by %c4_i32_71 dim 0 : vector<16x16xf32>, i32 -> vector<16x16xf32>
    %cst_72 = arith.constant 0.000000e+00 : f32
    %107 = vector.broadcast %cst_72 : f32 to vector<16x16xf32>
    %108 = vector.shape_cast %105 : vector<16x1xi1> to vector<16x1xi1>
    %109 = vector.broadcast %108 : vector<16x1xi1> to vector<16x16xi1>
    %110 = arith.select %109, %106, %107 : vector<16x16xi1>, vector<16x16xf32>
    %c0_73 = arith.constant 0 : index
    %c0_74 = arith.constant 0 : index
    %c0_75 = arith.constant 0 : index
    %111 = vector.load %arg14[%c0_73, %c0_74, %c0_75] : memref<2x16x16xf32, #tpu.memory_space<vmem>>, vector<1x16x16xf32>
    %112 = vector.shape_cast %111 : vector<1x16x16xf32> to vector<16x16xf32>
    %cst_76 = arith.constant dense<0.000000e+00> : vector<16x16xf32>
    %113 = tpu.matmul %110, %112, %cst_76 {dimension_numbers = #tpu.dot_dimension_numbers<[1], [0], [0], [1], [0, 0, 1, 1], [], []>} : vector<16x16xf32>, vector<16x16xf32>, vector<16x16xf32> -> vector<16x16xf32>
    %114 = arith.addf %103, %113 : vector<16x16xf32>
    %c1_77 = arith.constant 1 : index
    %c0_78 = arith.constant 0 : index
    %c0_79 = arith.constant 0 : index
    %115 = vector.load %arg14[%c1_77, %c0_78, %c0_79] : memref<2x16x16xf32, #tpu.memory_space<vmem>>, vector<1x16x16xf32>
    %116 = vector.shape_cast %115 : vector<1x16x16xf32> to vector<16x16xf32>
    %cst_80 = arith.constant dense<0.000000e+00> : vector<16x16xf32>
    %117 = tpu.matmul %102, %116, %cst_80 {dimension_numbers = #tpu.dot_dimension_numbers<[1], [0], [0], [1], [0, 0, 1, 1], [], []>} : vector<16x16xf32>, vector<16x16xf32>, vector<16x16xf32> -> vector<16x16xf32>
    %118 = arith.addf %114, %117 : vector<16x16xf32>
    %c0_81 = arith.constant 0 : index
    %c0_82 = arith.constant 0 : index
    %119 = vector.load %arg15[%c0_81, %c0_82] : memref<1x16xf32, #tpu.memory_space<vmem>>, vector<1x16xf32>
    %120 = vector.broadcast %119 : vector<1x16xf32> to vector<16x16xf32>
    %121 = arith.addf %118, %120 : vector<16x16xf32>
    %cst_83 = arith.constant 0.000000e+00 : f32
    %122 = vector.broadcast %cst_83 : f32 to vector<16x16xf32>
    %123 = arith.maximumf %121, %122 : vector<16x16xf32>
    %cst_84 = arith.constant 0.000000e+00 : f32
    %124 = vector.broadcast %cst_84 : f32 to vector<16x16xf32>
    %c4_i32_85 = arith.constant 4 : i32
    %125 = vector.broadcast %c4_i32_85 : i32 to vector<16x1xi32>
    %126 = arith.cmpi sge, %0, %125 : vector<16x1xi32>
    %c4_i32_86 = arith.constant 4 : i32
    %127 = tpu.dynamic_rotate %123 by %c4_i32_86 dim 0 : vector<16x16xf32>, i32 -> vector<16x16xf32>
    %cst_87 = arith.constant 0.000000e+00 : f32
    %128 = vector.broadcast %cst_87 : f32 to vector<16x16xf32>
    %129 = vector.shape_cast %126 : vector<16x1xi1> to vector<16x1xi1>
    %130 = vector.broadcast %129 : vector<16x1xi1> to vector<16x16xi1>
    %131 = arith.select %130, %127, %128 : vector<16x16xi1>, vector<16x16xf32>
    %c0_88 = arith.constant 0 : index
    %c0_89 = arith.constant 0 : index
    %c0_90 = arith.constant 0 : index
    %132 = vector.load %arg16[%c0_88, %c0_89, %c0_90] : memref<2x16x16xf32, #tpu.memory_space<vmem>>, vector<1x16x16xf32>
    %133 = vector.shape_cast %132 : vector<1x16x16xf32> to vector<16x16xf32>
    %cst_91 = arith.constant dense<0.000000e+00> : vector<16x16xf32>
    %134 = tpu.matmul %131, %133, %cst_91 {dimension_numbers = #tpu.dot_dimension_numbers<[1], [0], [0], [1], [0, 0, 1, 1], [], []>} : vector<16x16xf32>, vector<16x16xf32>, vector<16x16xf32> -> vector<16x16xf32>
    %135 = arith.addf %124, %134 : vector<16x16xf32>
    %c1_92 = arith.constant 1 : index
    %c0_93 = arith.constant 0 : index
    %c0_94 = arith.constant 0 : index
    %136 = vector.load %arg16[%c1_92, %c0_93, %c0_94] : memref<2x16x16xf32, #tpu.memory_space<vmem>>, vector<1x16x16xf32>
    %137 = vector.shape_cast %136 : vector<1x16x16xf32> to vector<16x16xf32>
    %cst_95 = arith.constant dense<0.000000e+00> : vector<16x16xf32>
    %138 = tpu.matmul %123, %137, %cst_95 {dimension_numbers = #tpu.dot_dimension_numbers<[1], [0], [0], [1], [0, 0, 1, 1], [], []>} : vector<16x16xf32>, vector<16x16xf32>, vector<16x16xf32> -> vector<16x16xf32>
    %139 = arith.addf %135, %138 : vector<16x16xf32>
    %c0_96 = arith.constant 0 : index
    %c0_97 = arith.constant 0 : index
    %140 = vector.load %arg17[%c0_96, %c0_97] : memref<1x16xf32, #tpu.memory_space<vmem>>, vector<1x16xf32>
    %141 = vector.broadcast %140 : vector<1x16xf32> to vector<16x16xf32>
    %142 = arith.addf %139, %141 : vector<16x16xf32>
    %cst_98 = arith.constant 0.000000e+00 : f32
    %143 = vector.broadcast %cst_98 : f32 to vector<16x16xf32>
    %144 = arith.maximumf %142, %143 : vector<16x16xf32>
    %145 = arith.addf %144, %102 : vector<16x16xf32>
    %cst_99 = arith.constant 0.000000e+00 : f32
    %146 = vector.broadcast %cst_99 : f32 to vector<16x16xf32>
    %147 = arith.maximumf %145, %146 : vector<16x16xf32>
    %c0_100 = arith.constant 0 : index
    %c0_101 = arith.constant 0 : index
    %c0_102 = arith.constant 0 : index
    %148 = vector.load %arg18[%c0_100, %c0_101, %c0_102] : memref<1x16x16xf32, #tpu.memory_space<vmem>>, vector<1x16x16xf32>
    %149 = vector.shape_cast %148 : vector<1x16x16xf32> to vector<16x16xf32>
    %150 = vector.shape_cast %147 : vector<16x16xf32> to vector<1x16x16xf32>
    tpu.vector_store %arg18[%c0_100, %c0_101, %c0_102], %150 {strides = array<i32>} : memref<1x16x16xf32, #tpu.memory_space<vmem>>, vector<1x16x16xf32>,
    return
  }
  func.func @transform_0(%arg0: i32) -> (i32, i32, i32) {
    %c0_i32 = arith.constant 0 : i32
    %c0_i32_0 = arith.constant 0 : i32
    %c0_i32_1 = arith.constant 0 : i32
    return %arg0, %c0_i32, %c0_i32_0 : i32, i32, i32
  }
  func.func @transform_1(%arg0: i32) -> (i32, i32, i32) {
    %c0_i32 = arith.constant 0 : i32
    %c0_i32_0 = arith.constant 0 : i32
    %c0_i32_1 = arith.constant 0 : i32
    %c0_i32_2 = arith.constant 0 : i32
    return %c0_i32, %c0_i32_0, %c0_i32_1 : i32, i32, i32
  }
  func.func @transform_2(%arg0: i32) -> (i32, i32) {
    %c0_i32 = arith.constant 0 : i32
    %c0_i32_0 = arith.constant 0 : i32
    %c0_i32_1 = arith.constant 0 : i32
    return %c0_i32, %c0_i32_0 : i32, i32
  }
  func.func @transform_3(%arg0: i32) -> (i32, i32, i32) {
    %c0_i32 = arith.constant 0 : i32
    %c0_i32_0 = arith.constant 0 : i32
    %c0_i32_1 = arith.constant 0 : i32
    %c0_i32_2 = arith.constant 0 : i32
    return %c0_i32, %c0_i32_0, %c0_i32_1 : i32, i32, i32
  }
  func.func @transform_4(%arg0: i32) -> (i32, i32) {
    %c0_i32 = arith.constant 0 : i32
    %c0_i32_0 = arith.constant 0 : i32
    %c0_i32_1 = arith.constant 0 : i32
    return %c0_i32, %c0_i32_0 : i32, i32
  }
  func.func @transform_5(%arg0: i32) -> (i32, i32) {
    %c0_i32 = arith.constant 0 : i32
    %c0_i32_0 = arith.constant 0 : i32
    %c0_i32_1 = arith.constant 0 : i32
    return %c0_i32, %c0_i32_0 : i32, i32
  }
  func.func @transform_6(%arg0: i32) -> (i32, i32) {
    %c0_i32 = arith.constant 0 : i32
    %c0_i32_0 = arith.constant 0 : i32
    %c0_i32_1 = arith.constant 0 : i32
    return %c0_i32, %c0_i32_0 : i32, i32
  }
  func.func @transform_7(%arg0: i32) -> (i32, i32, i32) {
    %c0_i32 = arith.constant 0 : i32
    %c0_i32_0 = arith.constant 0 : i32
    %c0_i32_1 = arith.constant 0 : i32
    %c0_i32_2 = arith.constant 0 : i32
    return %c0_i32, %c0_i32_0, %c0_i32_1 : i32, i32, i32
  }
  func.func @transform_8(%arg0: i32) -> (i32, i32) {
    %c0_i32 = arith.constant 0 : i32
    %c0_i32_0 = arith.constant 0 : i32
    %c0_i32_1 = arith.constant 0 : i32
    return %c0_i32, %c0_i32_0 : i32, i32
  }
  func.func @transform_9(%arg0: i32) -> (i32, i32, i32) {
    %c0_i32 = arith.constant 0 : i32
    %c0_i32_0 = arith.constant 0 : i32
    %c0_i32_1 = arith.constant 0 : i32
    %c0_i32_2 = arith.constant 0 : i32
    return %c0_i32, %c0_i32_0, %c0_i32_1 : i32, i32, i32
  }
  func.func @transform_10(%arg0: i32) -> (i32, i32) {
    %c0_i32 = arith.constant 0 : i32
    %c0_i32_0 = arith.constant 0 : i32
    %c0_i32_1 = arith.constant 0 : i32
    return %c0_i32, %c0_i32_0 : i32, i32
  }
  func.func @transform_11(%arg0: i32) -> (i32, i32) {
    %c0_i32 = arith.constant 0 : i32
    %c0_i32_0 = arith.constant 0 : i32
    %c0_i32_1 = arith.constant 0 : i32
    return %c0_i32, %c0_i32_0 : i32, i32
  }
  func.func @transform_12(%arg0: i32) -> (i32, i32) {
    %c0_i32 = arith.constant 0 : i32
    %c0_i32_0 = arith.constant 0 : i32
    %c0_i32_1 = arith.constant 0 : i32
    return %c0_i32, %c0_i32_0 : i32, i32
  }
  func.func @transform_13(%arg0: i32) -> (i32, i32, i32) {
    %c0_i32 = arith.constant 0 : i32
    %c0_i32_0 = arith.constant 0 : i32
    %c0_i32_1 = arith.constant 0 : i32
    %c0_i32_2 = arith.constant 0 : i32
    return %c0_i32, %c0_i32_0, %c0_i32_1 : i32, i32, i32
  }
  func.func @transform_14(%arg0: i32) -> (i32, i32) {
    %c0_i32 = arith.constant 0 : i32
    %c0_i32_0 = arith.constant 0 : i32
    %c0_i32_1 = arith.constant 0 : i32
    return %c0_i32, %c0_i32_0 : i32, i32
  }
  func.func @transform_15(%arg0: i32) -> (i32, i32, i32) {
    %c0_i32 = arith.constant 0 : i32
    %c0_i32_0 = arith.constant 0 : i32
    %c0_i32_1 = arith.constant 0 : i32
    %c0_i32_2 = arith.constant 0 : i32
    return %c0_i32, %c0_i32_0, %c0_i32_1 : i32, i32, i32
  }
  func.func @transform_16(%arg0: i32) -> (i32, i32) {
    %c0_i32 = arith.constant 0 : i32
    %c0_i32_0 = arith.constant 0 : i32
    %c0_i32_1 = arith.constant 0 : i32
    return %c0_i32, %c0_i32_0 : i32, i32
  }
  func.func @transform_17(%arg0: i32) -> (i32, i32, i32) {
    %c0_i32 = arith.constant 0 : i32
    %c0_i32_0 = arith.constant 0 : i32
    %c0_i32_1 = arith.constant 0 : i32
    return %arg0, %c0_i32, %c0_i32_0 : i32, i32, i32
  }
}

</mosaic_0001>

<llo_original>
// kernel: tpu_custom_call.1
$region0: #{tpu_custom_call.1}
  #allocation0 [shape = 'u32[]', space=smem, size = 0x4, offset = 0x4, fixed_abs, tag = 'smem constant byte address 0x4 - core index']
  #allocation1 [shape = 'u32[144,128]{1,0:T(1,128)}', space=vmem, size = 0x12000, scoped, tag = 'internal scratch']
  %s0 = inlined_call_operand.vmem [shape: f32[2,16,4], index: 0, kind: input, shape index: {}]
  %s1 = inlined_call_operand.hbm [shape: f32[2,4,8], index: 1, kind: input, shape index: {}]
  %s2 = inlined_call_operand.hbm [shape: f32[1,8], index: 2, kind: input, shape index: {}]
  %s3 = inlined_call_operand.hbm [shape: f32[2,8,8], index: 3, kind: input, shape index: {}]
  %s4 = inlined_call_operand.hbm [shape: f32[1,8], index: 4, kind: input, shape index: {}]
  %s5 = inlined_call_operand.hbm [shape: f32[4,8], index: 5, kind: input, shape index: {}]
  %s6 = inlined_call_operand.hbm [shape: f32[1,8], index: 6, kind: input, shape index: {}]
  %s7 = inlined_call_operand.hbm [shape: f32[2,8,16], index: 7, kind: input, shape index: {}]
  %s8 = inlined_call_operand.hbm [shape: f32[1,16], index: 8, kind: input, shape index: {}]
  %s9 = inlined_call_operand.vmem [shape: f32[2,16,16], index: 9, kind: input, shape index: {}]
  %s10 = inlined_call_operand.hbm [shape: f32[1,16], index: 10, kind: input, shape index: {}]
  %s11 = inlined_call_operand.hbm [shape: f32[8,16], index: 11, kind: input, shape index: {}]
  %s12 = inlined_call_operand.hbm [shape: f32[1,16], index: 12, kind: input, shape index: {}]
  %s13 = inlined_call_operand.vmem [shape: f32[2,16,16], index: 13, kind: input, shape index: {}]
  %s14 = inlined_call_operand.hbm [shape: f32[1,16], index: 14, kind: input, shape index: {}]
  %s15 = inlined_call_operand.vmem [shape: f32[2,16,16], index: 15, kind: input, shape index: {}]
  %s16 = inlined_call_operand.vmem [shape: f32[1,16], index: 16, kind: input, shape index: {}]
  %s17 = inlined_call_operand.hbm [shape: f32[2,16,16], index: 17, kind: output, shape index: {}]
  %s18 = sld [smem:[#allocation0]]
  $region149: #{tpu_custom_call.1} parent=0
    _
  %s20 = ssub.s32 1, %s18
  %s21 = scalar_select 0, %s20, %s18
  $region1: #{tpu_custom_call.1} parent=0
    #allocation2 [shape = 'u8[4096]{0}', space=vmem, size = 0x1000, scoped, tag = 'input window, operand 1, single buffered']
    #allocation3 [shape = 's32[2]{0}', space=sflag, size = 0x8, scoped, tag = 'scoped memory for tpu_custom_call.1']
    #allocation4 [shape = 's32[2]{0}', space=sflag, size = 0x8, scoped, tag = 'scoped memory for tpu_custom_call.1']
    #allocation5 [shape = 'u8[512]{0}', space=vmem, size = 0x400, scoped, tag = 'input window, operand 2, single buffered']
    #allocation6 [shape = 's32[1]{0}', space=sflag, size = 0x4, scoped, tag = 'scoped memory for tpu_custom_call.1']
    #allocation7 [shape = 'u8[8192]{0}', space=vmem, size = 0x2000, scoped, tag = 'input window, operand 3, single buffered']
    #allocation8 [shape = 'u8[512]{0}', space=vmem, size = 0x400, scoped, tag = 'input window, operand 4, single buffered']
    #allocation9 [shape = 's32[1]{0}', space=sflag, size = 0x4, scoped, tag = 'scoped memory for tpu_custom_call.1']
    #allocation10 [shape = 'u8[2048]{0}', space=vmem, size = 0x800, scoped, tag = 'input window, operand 5, single buffered']
    #allocation11 [shape = 'u8[512]{0}', space=vmem, size = 0x400, scoped, tag = 'input window, operand 6, single buffered']
    #allocation12 [shape = 's32[1]{0}', space=sflag, size = 0x4, scoped, tag = 'scoped memory for tpu_custom_call.1']
    #allocation13 [shape = 'u8[8192]{0}', space=vmem, size = 0x2000, scoped, tag = 'input window, operand 7, single buffered']
    #allocation14 [shape = 'u8[512]{0}', space=vmem, size = 0x400, scoped, tag = 'input window, operand 8, single buffered']
    #allocation15 [shape = 's32[1]{0}', space=sflag, size = 0x4, scoped, tag = 'scoped memory for tpu_custom_call.1']
    #allocation16 [shape = 'u8[512]{0}', space=vmem, size = 0x400, scoped, tag = 'input window, operand 10, single buffered']
    #allocation17 [shape = 'u8[4096]{0}', space=vmem, size = 0x1000, scoped, tag = 'input window, operand 11, single buffered']
    #allocation18 [shape = 's32[1]{0}', space=sflag, size = 0x4, scoped, tag = 'scoped memory for tpu_custom_call.1']
    #allocation19 [shape = 'u8[512]{0}', space=vmem, size = 0x400, scoped, tag = 'input window, operand 12, single buffered']
    #allocation20 [shape = 'u8[512]{0}', space=vmem, size = 0x400, scoped, tag = 'input window, operand 14, single buffered']
    #allocation21 [shape = 's32[1]{0}', space=sflag, size = 0x4, scoped, tag = 'scoped memory for tpu_custom_call.1']
    #allocation22 [shape = 'u8[16384]{0}', space=vmem, size = 0x4000, scoped, tag = 'output window, operand 0']
    %22 = vsyncpa [#allocation3], 0
    %23 = vsyncpa [#allocation6], 0
    %24 = vsyncpa [#allocation9], 0
    %25 = vsyncpa [#allocation12], 0
    %26 = vsyncpa [#allocation15], 0
    %27 = vsyncpa [#allocation18], 0
    %28 = vsyncpa [#allocation21], 0
    %29 = vsyncpa [#allocation4], 0
    %s30 = scalar_lea.sflag [#allocation4], 1
    %31 = vsyncpa %s30, 0
    loop: start=0, step=1, limit=4
    $region2: #{tpu_custom_call.1} parent=1 // loop_pre_header
      _
    $region3: #{tpu_custom_call.1} parent=1 // loop_header
      %s33 = sphi 0, %s37
      %p34 = scmp.ge.s32.totalorder %s33, 4
      %s43 = sphi 0, %s45
      %s46 = sphi 0, %s43
      %s47 = sphi 0, %s46
      %s63 = sphi 0, %s47
      %s67 = sphi 0, %s67
      %s69 = sphi 0, %s67
      %s70 = sphi 0, %s69
      %s84 = sphi 0, %s70
      %s88 = sphi 0, %s88
      %s90 = sphi 0, %s88
      %s91 = sphi 0, %s90
      %s105 = sphi 0, %s91
      %s109 = sphi 0, %s109
      %s111 = sphi 0, %s109
      %s112 = sphi 0, %s111
      %s126 = sphi 0, %s112
      %s130 = sphi 0, %s130
      %s132 = sphi 0, %s130
      %s133 = sphi 0, %s132
      %s147 = sphi 0, %s133
      %s151 = sphi 0, %s151
      %s153 = sphi 0, %s151
      %s154 = sphi 0, %s153
      %s168 = sphi 0, %s154
      %s172 = sphi 0, %s172
      %s174 = sphi 0, %s172
      %s175 = sphi 0, %s174
      %s189 = sphi 0, %s175
      %s193 = sphi 0, %s193
      %s195 = sphi 0, %s193
      %s196 = sphi 0, %s195
      %s210 = sphi 0, %s196
      %s214 = sphi 0, %s214
      %s216 = sphi 0, %s214
      %s217 = sphi 0, %s216
      %s231 = sphi 0, %s217
      %s235 = sphi 0, %s235
      %s237 = sphi 0, %s235
      %s238 = sphi 0, %s237
      %s252 = sphi 0, %s238
      %s256 = sphi 0, %s256
      %s258 = sphi 0, %s256
      %s259 = sphi 0, %s258
      %s273 = sphi 0, %s259
      %s277 = sphi 0, %s277
      %s279 = sphi 0, %s277
      %s280 = sphi 0, %s279
      %s294 = sphi 0, %s280
      %s298 = sphi 0, %s298
      %s300 = sphi 0, %s298
      %s301 = sphi 0, %s300
      %s315 = sphi 0, %s301
      %s319 = sphi 0, %s319
      %s321 = sphi 0, %s319
      %s322 = sphi 0, %s321
      %s336 = sphi 0, %s322
      %s340 = sphi 0, %s340
      %s342 = sphi 0, %s340
      %s343 = sphi 0, %s342
      %s357 = sphi 0, %s343
      %s361 = sphi 0, %s361
      %s363 = sphi 0, %s361
      %s364 = sphi 0, %s363
      %s378 = sphi 0, %s364
      %s382 = sphi 0, %s382
      %s384 = sphi 0, %s382
      %s385 = sphi 0, %s384
      %s399 = sphi 0, %s385
      %s405 = sphi 0, %s407
      %s408 = sphi 0, %s405
      %s409 = sphi 0, %s408
      %s425 = sphi 0, %s409
    $region4: #{tpu_custom_call.1} parent=1 // loop_header_branch
      %36 = sbr.rel (%p34) target = $region8
    $region5: #{tpu_custom_call.1} parent=1 // loop_body
      %s38 = ssub.s32 %s33, 1
      %s39 = ssub.s32 %s33, 2
      %s40 = sadd.s32 %s33, 1
      %s41 = ssub.s32 %s33, %s40
      %p42 = scmp.eq.s32.totalorder %s41, 0
      %s44 = sadd.s32 %s43, 1
      %s45 = scalar_select %p42, %s43, %s44
      %p48 = pneg %p42
      %p49 = scmp.eq.s32.totalorder %s33, 1
      %p50 = por %p48, %p49
      %p51 = scmp.ne.s32.totalorder %s43, %s46
      %p52 = scmp.eq.s32.totalorder %s33, 0
      %p53 = por %p51, %p52
      %p54 = scmp.ne.s32.totalorder %s43, %s46
      %p55 = scmp.eq.s32.totalorder %s38, 1
      %p56 = por %p54, %p55
      %p57 = scmp.ne.s32.totalorder %s46, %s47
      %p58 = scmp.eq.s32.totalorder %s38, 0
      %p59 = por %p57, %p58
      %p60 = scmp.ne.s32.totalorder %s46, %s47
      %p61 = scmp.eq.s32.totalorder %s39, 1
      %p62 = por %p60, %p61
      %p64 = scmp.ne.s32.totalorder %s47, %s63
      %p65 = scmp.eq.s32.totalorder %s39, 0
      %p66 = por %p64, %p65
      %s68 = sadd.s32 %s67, 1
      %p71 = scmp.eq.s32.totalorder %s33, 1
      %p72 = scmp.ne.s32.totalorder %s67, %s69
      %p73 = scmp.eq.s32.totalorder %s33, 0
      %p74 = por %p72, %p73
      %p75 = scmp.ne.s32.totalorder %s67, %s69
      %p76 = scmp.eq.s32.totalorder %s38, 1
      %p77 = por %p75, %p76
      %p78 = scmp.ne.s32.totalorder %s69, %s70
      %p79 = scmp.eq.s32.totalorder %s38, 0
      %p80 = por %p78, %p79
      %p81 = scmp.ne.s32.totalorder %s69, %s70
      %p82 = scmp.eq.s32.totalorder %s39, 1
      %p83 = por %p81, %p82
      %p85 = scmp.ne.s32.totalorder %s70, %s84
      %p86 = scmp.eq.s32.totalorder %s39, 0
      %p87 = por %p85, %p86
      %s89 = sadd.s32 %s88, 1
      %p92 = scmp.eq.s32.totalorder %s33, 1
      %p93 = scmp.ne.s32.totalorder %s88, %s90
      %p94 = scmp.eq.s32.totalorder %s33, 0
      %p95 = por %p93, %p94
      %p96 = scmp.ne.s32.totalorder %s88, %s90
      %p97 = scmp.eq.s32.totalorder %s38, 1
      %p98 = por %p96, %p97
      %p99 = scmp.ne.s32.totalorder %s90, %s91
      %p100 = scmp.eq.s32.totalorder %s38, 0
      %p101 = por %p99, %p100
      %p102 = scmp.ne.s32.totalorder %s90, %s91
      %p103 = scmp.eq.s32.totalorder %s39, 1
      %p104 = por %p102, %p103
      %p106 = scmp.ne.s32.totalorder %s91, %s105
      %p107 = scmp.eq.s32.totalorder %s39, 0
      %p108 = por %p106, %p107
      %s110 = sadd.s32 %s109, 1
      %p113 = scmp.eq.s32.totalorder %s33, 1
      %p114 = scmp.ne.s32.totalorder %s109, %s111
      %p115 = scmp.eq.s32.totalorder %s33, 0
      %p116 = por %p114, %p115
      %p117 = scmp.ne.s32.totalorder %s109, %s111
      %p118 = scmp.eq.s32.totalorder %s38, 1
      %p119 = por %p117, %p118
      %p120 = scmp.ne.s32.totalorder %s111, %s112
      %p121 = scmp.eq.s32.totalorder %s38, 0
      %p122 = por %p120, %p121
      %p123 = scmp.ne.s32.totalorder %s111, %s112
      %p124 = scmp.eq.s32.totalorder %s39, 1
      %p125 = por %p123, %p124
      %p127 = scmp.ne.s32.totalorder %s112, %s126
      %p128 = scmp.eq.s32.totalorder %s39, 0
      %p129 = por %p127, %p128
      %s131 = sadd.s32 %s130, 1
      %p134 = scmp.eq.s32.totalorder %s33, 1
      %p135 = scmp.ne.s32.totalorder %s130, %s132
      %p136 = scmp.eq.s32.totalorder %s33, 0
      %p137 = por %p135, %p136
      %p138 = scmp.ne.s32.totalorder %s130, %s132
      %p139 = scmp.eq.s32.totalorder %s38, 1
      %p140 = por %p138, %p139
      %p141 = scmp.ne.s32.totalorder %s132, %s133
      %p142 = scmp.eq.s32.totalorder %s38, 0
      %p143 = por %p141, %p142
      %p144 = scmp.ne.s32.totalorder %s132, %s133
      %p145 = scmp.eq.s32.totalorder %s39, 1
      %p146 = por %p144, %p145
      %p148 = scmp.ne.s32.totalorder %s133, %s147
      %p149 = scmp.eq.s32.totalorder %s39, 0
      %p150 = por %p148, %p149
      %s152 = sadd.s32 %s151, 1
      %p155 = scmp.eq.s32.totalorder %s33, 1
      %p156 = scmp.ne.s32.totalorder %s151, %s153
      %p157 = scmp.eq.s32.totalorder %s33, 0
      %p158 = por %p156, %p157
      %p159 = scmp.ne.s32.totalorder %s151, %s153
      %p160 = scmp.eq.s32.totalorder %s38, 1
      %p161 = por %p159, %p160
      %p162 = scmp.ne.s32.totalorder %s153, %s154
      %p163 = scmp.eq.s32.totalorder %s38, 0
      %p164 = por %p162, %p163
      %p165 = scmp.ne.s32.totalorder %s153, %s154
      %p166 = scmp.eq.s32.totalorder %s39, 1
      %p167 = por %p165, %p166
      %p169 = scmp.ne.s32.totalorder %s154, %s168
      %p170 = scmp.eq.s32.totalorder %s39, 0
      %p171 = por %p169, %p170
      %s173 = sadd.s32 %s172, 1
      %p176 = scmp.eq.s32.totalorder %s33, 1
      %p177 = scmp.ne.s32.totalorder %s172, %s174
      %p178 = scmp.eq.s32.totalorder %s33, 0
      %p179 = por %p177, %p178
      %p180 = scmp.ne.s32.totalorder %s172, %s174
      %p181 = scmp.eq.s32.totalorder %s38, 1
      %p182 = por %p180, %p181
      %p183 = scmp.ne.s32.totalorder %s174, %s175
      %p184 = scmp.eq.s32.totalorder %s38, 0
      %p185 = por %p183, %p184
      %p186 = scmp.ne.s32.totalorder %s174, %s175
      %p187 = scmp.eq.s32.totalorder %s39, 1
      %p188 = por %p186, %p187
      %p190 = scmp.ne.s32.totalorder %s175, %s189
      %p191 = scmp.eq.s32.totalorder %s39, 0
      %p192 = por %p190, %p191
      %s194 = sadd.s32 %s193, 1
      %p197 = scmp.eq.s32.totalorder %s33, 1
      %p198 = scmp.ne.s32.totalorder %s193, %s195
      %p199 = scmp.eq.s32.totalorder %s33, 0
      %p200 = por %p198, %p199
      %p201 = scmp.ne.s32.totalorder %s193, %s195
      %p202 = scmp.eq.s32.totalorder %s38, 1
      %p203 = por %p201, %p202
      %p204 = scmp.ne.s32.totalorder %s195, %s196
      %p205 = scmp.eq.s32.totalorder %s38, 0
      %p206 = por %p204, %p205
      %p207 = scmp.ne.s32.totalorder %s195, %s196
      %p208 = scmp.eq.s32.totalorder %s39, 1
      %p209 = por %p207, %p208
      %p211 = scmp.ne.s32.totalorder %s196, %s210
      %p212 = scmp.eq.s32.totalorder %s39, 0
      %p213 = por %p211, %p212
      %s215 = sadd.s32 %s214, 1
      %p218 = scmp.eq.s32.totalorder %s33, 1
      %p219 = scmp.ne.s32.totalorder %s214, %s216
      %p220 = scmp.eq.s32.totalorder %s33, 0
      %p221 = por %p219, %p220
      %p222 = scmp.ne.s32.totalorder %s214, %s216
      %p223 = scmp.eq.s32.totalorder %s38, 1
      %p224 = por %p222, %p223
      %p225 = scmp.ne.s32.totalorder %s216, %s217
      %p226 = scmp.eq.s32.totalorder %s38, 0
      %p227 = por %p225, %p226
      %p228 = scmp.ne.s32.totalorder %s216, %s217
      %p229 = scmp.eq.s32.totalorder %s39, 1
      %p230 = por %p228, %p229
      %p232 = scmp.ne.s32.totalorder %s217, %s231
      %p233 = scmp.eq.s32.totalorder %s39, 0
      %p234 = por %p232, %p233
      %s236 = sadd.s32 %s235, 1
      %p239 = scmp.eq.s32.totalorder %s33, 1
      %p240 = scmp.ne.s32.totalorder %s235, %s237
      %p241 = scmp.eq.s32.totalorder %s33, 0
      %p242 = por %p240, %p241
      %p243 = scmp.ne.s32.totalorder %s235, %s237
      %p244 = scmp.eq.s32.totalorder %s38, 1
      %p245 = por %p243, %p244
      %p246 = scmp.ne.s32.totalorder %s237, %s238
      %p247 = scmp.eq.s32.totalorder %s38, 0
      %p248 = por %p246, %p247
      %p249 = scmp.ne.s32.totalorder %s237, %s238
      %p250 = scmp.eq.s32.totalorder %s39, 1
      %p251 = por %p249, %p250
      %p253 = scmp.ne.s32.totalorder %s238, %s252
      %p254 = scmp.eq.s32.totalorder %s39, 0
      %p255 = por %p253, %p254
      %s257 = sadd.s32 %s256, 1
      %p260 = scmp.eq.s32.totalorder %s33, 1
      %p261 = scmp.ne.s32.totalorder %s256, %s258
      %p262 = scmp.eq.s32.totalorder %s33, 0
      %p263 = por %p261, %p262
      %p264 = scmp.ne.s32.totalorder %s256, %s258
      %p265 = scmp.eq.s32.totalorder %s38, 1
      %p266 = por %p264, %p265
      %p267 = scmp.ne.s32.totalorder %s258, %s259
      %p268 = scmp.eq.s32.totalorder %s38, 0
      %p269 = por %p267, %p268
      %p270 = scmp.ne.s32.totalorder %s258, %s259
      %p271 = scmp.eq.s32.totalorder %s39, 1
      %p272 = por %p270, %p271
      %p274 = scmp.ne.s32.totalorder %s259, %s273
      %p275 = scmp.eq.s32.totalorder %s39, 0
      %p276 = por %p274, %p275
      %s278 = sadd.s32 %s277, 1
      %p281 = scmp.eq.s32.totalorder %s33, 1
      %p282 = scmp.ne.s32.totalorder %s277, %s279
      %p283 = scmp.eq.s32.totalorder %s33, 0
      %p284 = por %p282, %p283
      %p285 = scmp.ne.s32.totalorder %s277, %s279
      %p286 = scmp.eq.s32.totalorder %s38, 1
      %p287 = por %p285, %p286
      %p288 = scmp.ne.s32.totalorder %s279, %s280
      %p289 = scmp.eq.s32.totalorder %s38, 0
      %p290 = por %p288, %p289
      %p291 = scmp.ne.s32.totalorder %s279, %s280
      %p292 = scmp.eq.s32.totalorder %s39, 1
      %p293 = por %p291, %p292
      %p295 = scmp.ne.s32.totalorder %s280, %s294
      %p296 = scmp.eq.s32.totalorder %s39, 0
      %p297 = por %p295, %p296
      %s299 = sadd.s32 %s298, 1
      %p302 = scmp.eq.s32.totalorder %s33, 1
      %p303 = scmp.ne.s32.totalorder %s298, %s300
      %p304 = scmp.eq.s32.totalorder %s33, 0
      %p305 = por %p303, %p304
      %p306 = scmp.ne.s32.totalorder %s298, %s300
      %p307 = scmp.eq.s32.totalorder %s38, 1
      %p308 = por %p306, %p307
      %p309 = scmp.ne.s32.totalorder %s300, %s301
      %p310 = scmp.eq.s32.totalorder %s38, 0
      %p311 = por %p309, %p310
      %p312 = scmp.ne.s32.totalorder %s300, %s301
      %p313 = scmp.eq.s32.totalorder %s39, 1
      %p314 = por %p312, %p313
      %p316 = scmp.ne.s32.totalorder %s301, %s315
      %p317 = scmp.eq.s32.totalorder %s39, 0
      %p318 = por %p316, %p317
      %s320 = sadd.s32 %s319, 1
      %p323 = scmp.eq.s32.totalorder %s33, 1
      %p324 = scmp.ne.s32.totalorder %s319, %s321
      %p325 = scmp.eq.s32.totalorder %s33, 0
      %p326 = por %p324, %p325
      %p327 = scmp.ne.s32.totalorder %s319, %s321
      %p328 = scmp.eq.s32.totalorder %s38, 1
      %p329 = por %p327, %p328
      %p330 = scmp.ne.s32.totalorder %s321, %s322
      %p331 = scmp.eq.s32.totalorder %s38, 0
      %p332 = por %p330, %p331
      %p333 = scmp.ne.s32.totalorder %s321, %s322
      %p334 = scmp.eq.s32.totalorder %s39, 1
      %p335 = por %p333, %p334
      %p337 = scmp.ne.s32.totalorder %s322, %s336
      %p338 = scmp.eq.s32.totalorder %s39, 0
      %p339 = por %p337, %p338
      %s341 = sadd.s32 %s340, 1
      %p344 = scmp.eq.s32.totalorder %s33, 1
      %p345 = scmp.ne.s32.totalorder %s340, %s342
      %p346 = scmp.eq.s32.totalorder %s33, 0
      %p347 = por %p345, %p346
      %p348 = scmp.ne.s32.totalorder %s340, %s342
      %p349 = scmp.eq.s32.totalorder %s38, 1
      %p350 = por %p348, %p349
      %p351 = scmp.ne.s32.totalorder %s342, %s343
      %p352 = scmp.eq.s32.totalorder %s38, 0
      %p353 = por %p351, %p352
      %p354 = scmp.ne.s32.totalorder %s342, %s343
      %p355 = scmp.eq.s32.totalorder %s39, 1
      %p356 = por %p354, %p355
      %p358 = scmp.ne.s32.totalorder %s343, %s357
      %p359 = scmp.eq.s32.totalorder %s39, 0
      %p360 = por %p358, %p359
      %s362 = sadd.s32 %s361, 1
      %p365 = scmp.eq.s32.totalorder %s33, 1
      %p366 = scmp.ne.s32.totalorder %s361, %s363
      %p367 = scmp.eq.s32.totalorder %s33, 0
      %p368 = por %p366, %p367
      %p369 = scmp.ne.s32.totalorder %s361, %s363
      %p370 = scmp.eq.s32.totalorder %s38, 1
      %p371 = por %p369, %p370
      %p372 = scmp.ne.s32.totalorder %s363, %s364
      %p373 = scmp.eq.s32.totalorder %s38, 0
      %p374 = por %p372, %p373
      %p375 = scmp.ne.s32.totalorder %s363, %s364
      %p376 = scmp.eq.s32.totalorder %s39, 1
      %p377 = por %p375, %p376
      %p379 = scmp.ne.s32.totalorder %s364, %s378
      %p380 = scmp.eq.s32.totalorder %s39, 0
      %p381 = por %p379, %p380
      %s383 = sadd.s32 %s382, 1
      %p386 = scmp.eq.s32.totalorder %s33, 1
      %p387 = scmp.ne.s32.totalorder %s382, %s384
      %p388 = scmp.eq.s32.totalorder %s33, 0
      %p389 = por %p387, %p388
      %p390 = scmp.ne.s32.totalorder %s382, %s384
      %p391 = scmp.eq.s32.totalorder %s38, 1
      %p392 = por %p390, %p391
      %p393 = scmp.ne.s32.totalorder %s384, %s385
      %p394 = scmp.eq.s32.totalorder %s38, 0
      %p395 = por %p393, %p394
      %p396 = scmp.ne.s32.totalorder %s384, %s385
      %p397 = scmp.eq.s32.totalorder %s39, 1
      %p398 = por %p396, %p397
      %p400 = scmp.ne.s32.totalorder %s385, %s399
      %p401 = scmp.eq.s32.totalorder %s39, 0
      %p402 = por %p400, %p401
      %s403 = ssub.s32 %s33, %s40
      %p404 = scmp.eq.s32.totalorder %s403, 0
      %s406 = sadd.s32 %s405, 1
      %s407 = scalar_select %p404, %s405, %s406
      %p410 = pneg %p404
      %p411 = scmp.eq.s32.totalorder %s33, 1
      %p412 = por %p410, %p411
      %p413 = scmp.ne.s32.totalorder %s405, %s408
      %p414 = scmp.eq.s32.totalorder %s33, 0
      %p415 = por %p413, %p414
      %p416 = scmp.ne.s32.totalorder %s405, %s408
      %p417 = scmp.eq.s32.totalorder %s38, 1
      %p418 = por %p416, %p417
      %p419 = scmp.ne.s32.totalorder %s408, %s409
      %p420 = scmp.eq.s32.totalorder %s38, 0
      %p421 = por %p419, %p420
      %p422 = scmp.ne.s32.totalorder %s408, %s409
      %p423 = scmp.eq.s32.totalorder %s39, 1
      %p424 = por %p422, %p423
      %p426 = scmp.ne.s32.totalorder %s409, %s425
      %p427 = scmp.eq.s32.totalorder %s39, 0
      %p428 = por %p426, %p427
      %p429 = scmp.le.s32.totalorder 1, %s33
      %p430 = scmp.lt.s32.totalorder %s33, 3
      %p431 = pnand %p429, %p430
      %p432 = pneg %p431
      // Predicated region
      $region9: #{tpu_custom_call.1} parent=5 // pred_check
        _
      $region10: #{tpu_custom_call.1} parent=5 // pred_check_branch
        %434 = sbr.rel (%p431) target = $region12
      $region11: #{tpu_custom_call.1} parent=5 // pred_region
        %s435 = ssub.s32 %s33, 1
        // Predicated region
        $region13: #{tpu_custom_call.1} parent=11 // pred_check
          %p436 = pneg %p80
        $region14: #{tpu_custom_call.1} parent=11 // pred_check_branch
          %438 = sbr.rel (%p436) target = $region16
        $region15: #{tpu_custom_call.1} parent=11 // pred_region
          %s440 = ssub.s32 128, 128
          %441 = vsyncadd [#allocation3], %s440
          %s442 = sshll.u32 [#allocation2], 4
          %s443 = int_to_ptr.vmem [resolvable:$true] %s442
          %448 = dma.hbm_to_vmem [thread:$0]  %s1, 128, %s443, [#allocation3], 64, 64, 4
        $region16: #{tpu_custom_call.1} parent=11 // pred_fallthru
          _
        // Predicated region
        $region17: #{tpu_custom_call.1} parent=11 // pred_check
          %p449 = pneg %p101
        $region18: #{tpu_custom_call.1} parent=11 // pred_check_branch
          %451 = sbr.rel (%p449) target = $region20
        $region19: #{tpu_custom_call.1} parent=11 // pred_region
          %s453 = ssub.s32 16, 16
          %454 = vsyncadd [#allocation6], %s453
          %s456 = sshll.u32 [#allocation5], 4
          %s457 = int_to_ptr.vmem [resolvable:$true] %s456
          %459 = dma.hbm_to_vmem [thread:$0]  %s2, 16, %s457, [#allocation6]
        $region20: #{tpu_custom_call.1} parent=11 // pred_fallthru
          _
        // Predicated region
        $region21: #{tpu_custom_call.1} parent=11 // pred_check
          %p460 = pneg %p122
        $region22: #{tpu_custom_call.1} parent=11 // pred_check_branch
          %462 = sbr.rel (%p460) target = $region24
        $region23: #{tpu_custom_call.1} parent=11 // pred_region
          %s464 = ssub.s32 256, 256
          %465 = vsyncadd [#allocation6], %s464
          %s466 = sshll.u32 [#allocation7], 4
          %s467 = int_to_ptr.vmem [resolvable:$true] %s466
          %472 = dma.hbm_to_vmem [thread:$0]  %s3, 256, %s467, [#allocation6], 128, 128, 8
        $region24: #{tpu_custom_call.1} parent=11 // pred_fallthru
          _
        // Predicated region
        $region25: #{tpu_custom_call.1} parent=11 // pred_check
          %p473 = pneg %p143
        $region26: #{tpu_custom_call.1} parent=11 // pred_check_branch
          %475 = sbr.rel (%p473) target = $region28
        $region27: #{tpu_custom_call.1} parent=11 // pred_region
          %s477 = ssub.s32 16, 16
          %478 = vsyncadd [#allocation9], %s477
          %s480 = sshll.u32 [#allocation8], 4
          %s481 = int_to_ptr.vmem [resolvable:$true] %s480
          %483 = dma.hbm_to_vmem [thread:$0]  %s4, 16, %s481, [#allocation9]
        $region28: #{tpu_custom_call.1} parent=11 // pred_fallthru
          _
        // Predicated region
        $region29: #{tpu_custom_call.1} parent=11 // pred_check
          %p484 = pneg %p164
        $region30: #{tpu_custom_call.1} parent=11 // pred_check_branch
          %486 = sbr.rel (%p484) target = $region32
        $region31: #{tpu_custom_call.1} parent=11 // pred_region
          %s488 = ssub.s32 64, 64
          %489 = vsyncadd [#allocation9], %s488
          %s491 = sshll.u32 [#allocation10], 4
          %s492 = int_to_ptr.vmem [resolvable:$true] %s491
          %494 = dma.hbm_to_vmem [thread:$0]  %s5, 64, %s492, [#allocation9]
        $region32: #{tpu_custom_call.1} parent=11 // pred_fallthru
          _
        // Predicated region
        $region33: #{tpu_custom_call.1} parent=11 // pred_check
          %p495 = pneg %p185
        $region34: #{tpu_custom_call.1} parent=11 // pred_check_branch
          %497 = sbr.rel (%p495) target = $region36
        $region35: #{tpu_custom_call.1} parent=11 // pred_region
          %s499 = ssub.s32 16, 16
          %500 = vsyncadd [#allocation12], %s499
          %s502 = sshll.u32 [#allocation11], 4
          %s503 = int_to_ptr.vmem [resolvable:$true] %s502
          %505 = dma.hbm_to_vmem [thread:$0]  %s6, 16, %s503, [#allocation12]
        $region36: #{tpu_custom_call.1} parent=11 // pred_fallthru
          _
        // Predicated region
        $region37: #{tpu_custom_call.1} parent=11 // pred_check
          %p506 = pneg %p206
        $region38: #{tpu_custom_call.1} parent=11 // pred_check_branch
          %508 = sbr.rel (%p506) target = $region40
        $region39: #{tpu_custom_call.1} parent=11 // pred_region
          %s510 = ssub.s32 256, 256
          %511 = vsyncadd [#allocation12], %s510
          %s512 = sshll.u32 [#allocation13], 4
          %s513 = int_to_ptr.vmem [resolvable:$true] %s512
          %518 = dma.hbm_to_vmem [thread:$0]  %s7, 256, %s513, [#allocation12], 128, 128, 8
        $region40: #{tpu_custom_call.1} parent=11 // pred_fallthru
          _
        // Predicated region
        $region41: #{tpu_custom_call.1} parent=11 // pred_check
          %p519 = pneg %p227
        $region42: #{tpu_custom_call.1} parent=11 // pred_check_branch
          %521 = sbr.rel (%p519) target = $region44
        $region43: #{tpu_custom_call.1} parent=11 // pred_region
          %s523 = ssub.s32 16, 16
          %524 = vsyncadd [#allocation15], %s523
          %s526 = sshll.u32 [#allocation14], 4
          %s527 = int_to_ptr.vmem [resolvable:$true] %s526
          %529 = dma.hbm_to_vmem [thread:$0]  %s8, 16, %s527, [#allocation15]
        $region44: #{tpu_custom_call.1} parent=11 // pred_fallthru
          _
        // Predicated region
        $region45: #{tpu_custom_call.1} parent=11 // pred_check
          %p530 = pneg %p248
        $region46: #{tpu_custom_call.1} parent=11 // pred_check_branch
          %532 = sbr.rel (%p530) target = $region48
        $region47: #{tpu_custom_call.1} parent=11 // pred_region
          _
        $region48: #{tpu_custom_call.1} parent=11 // pred_fallthru
          _
        // Predicated region
        $region49: #{tpu_custom_call.1} parent=11 // pred_check
          %p533 = pneg %p269
        $region50: #{tpu_custom_call.1} parent=11 // pred_check_branch
          %535 = sbr.rel (%p533) target = $region52
        $region51: #{tpu_custom_call.1} parent=11 // pred_region
          %s537 = ssub.s32 16, 16
          %538 = vsyncadd [#allocation15], %s537
          %s540 = sshll.u32 [#allocation16], 4
          %s541 = int_to_ptr.vmem [resolvable:$true] %s540
          %543 = dma.hbm_to_vmem [thread:$0]  %s10, 16, %s541, [#allocation15]
        $region52: #{tpu_custom_call.1} parent=11 // pred_fallthru
          _
        // Predicated region
        $region53: #{tpu_custom_call.1} parent=11 // pred_check
          %p544 = pneg %p290
        $region54: #{tpu_custom_call.1} parent=11 // pred_check_branch
          %546 = sbr.rel (%p544) target = $region56
        $region55: #{tpu_custom_call.1} parent=11 // pred_region
          %s548 = ssub.s32 128, 128
          %549 = vsyncadd [#allocation18], %s548
          %s551 = sshll.u32 [#allocation17], 4
          %s552 = int_to_ptr.vmem [resolvable:$true] %s551
          %554 = dma.hbm_to_vmem [thread:$0]  %s11, 128, %s552, [#allocation18]
        $region56: #{tpu_custom_call.1} parent=11 // pred_fallthru
          _
        // Predicated region
        $region57: #{tpu_custom_call.1} parent=11 // pred_check
          %p555 = pneg %p311
        $region58: #{tpu_custom_call.1} parent=11 // pred_check_branch
          %557 = sbr.rel (%p555) target = $region60
        $region59: #{tpu_custom_call.1} parent=11 // pred_region
          %s559 = ssub.s32 16, 16
          %560 = vsyncadd [#allocation18], %s559
          %s562 = sshll.u32 [#allocation19], 4
          %s563 = int_to_ptr.vmem [resolvable:$true] %s562
          %565 = dma.hbm_to_vmem [thread:$0]  %s12, 16, %s563, [#allocation18]
        $region60: #{tpu_custom_call.1} parent=11 // pred_fallthru
          _
        // Predicated region
        $region61: #{tpu_custom_call.1} parent=11 // pred_check
          %p566 = pneg %p332
        $region62: #{tpu_custom_call.1} parent=11 // pred_check_branch
          %568 = sbr.rel (%p566) target = $region64
        $region63: #{tpu_custom_call.1} parent=11 // pred_region
          _
        $region64: #{tpu_custom_call.1} parent=11 // pred_fallthru
          _
        // Predicated region
        $region65: #{tpu_custom_call.1} parent=11 // pred_check
          %p569 = pneg %p353
        $region66: #{tpu_custom_call.1} parent=11 // pred_check_branch
          %571 = sbr.rel (%p569) target = $region68
        $region67: #{tpu_custom_call.1} parent=11 // pred_region
          %s573 = ssub.s32 16, 16
          %574 = vsyncadd [#allocation21], %s573
          %s576 = sshll.u32 [#allocation20], 4
          %s577 = int_to_ptr.vmem [resolvable:$true] %s576
          %579 = dma.hbm_to_vmem [thread:$0]  %s14, 16, %s577, [#allocation21]
        $region68: #{tpu_custom_call.1} parent=11 // pred_fallthru
          _
        // Predicated region
        $region69: #{tpu_custom_call.1} parent=11 // pred_check
          %p580 = pneg %p374
        $region70: #{tpu_custom_call.1} parent=11 // pred_check_branch
          %582 = sbr.rel (%p580) target = $region72
        $region71: #{tpu_custom_call.1} parent=11 // pred_region
          _
        $region72: #{tpu_custom_call.1} parent=11 // pred_fallthru
          _
        // Predicated region
        $region73: #{tpu_custom_call.1} parent=11 // pred_check
          %p583 = pneg %p395
        $region74: #{tpu_custom_call.1} parent=11 // pred_check_branch
          %585 = sbr.rel (%p583) target = $region76
        $region75: #{tpu_custom_call.1} parent=11 // pred_region
          _
        $region76: #{tpu_custom_call.1} parent=11 // pred_fallthru
          _
      $region12: #{tpu_custom_call.1} parent=5 // pred_fallthru
        _
      %p586 = scmp.lt.s32.totalorder %s33, 2
      // Predicated region
      $region77: #{tpu_custom_call.1} parent=5 // pred_check
        %p587 = pneg %p586
      $region78: #{tpu_custom_call.1} parent=5 // pred_check_branch
        %589 = sbr.rel (%p587) target = $region80
      $region79: #{tpu_custom_call.1} parent=5 // pred_region
        // Predicated region
        $region81: #{tpu_custom_call.1} parent=79 // pred_check
          %p590 = pneg %p53
        $region82: #{tpu_custom_call.1} parent=79 // pred_check_branch
          %592 = sbr.rel (%p590) target = $region84
        $region83: #{tpu_custom_call.1} parent=79 // pred_region
          %p593 = scmp.lt.s32.totalorder %s33, 1
          %s594 = scalar_select %p593, %s33, 1
          %s595 = smul.addr %s594, 2
          %s596 = smul.addr %s595, 8
          %s597 = scalar_lea.vmem %s0, %s596
        $region84: #{tpu_custom_call.1} parent=79 // pred_fallthru
          _
      $region80: #{tpu_custom_call.1} parent=5 // pred_fallthru
        _
      %p598 = scmp.le.s32.totalorder 1, %s33
      %p599 = scmp.lt.s32.totalorder %s33, 3
      %p600 = pnand %p598, %p599
      %p601 = pneg %p600
      // Predicated region
      $region85: #{tpu_custom_call.1} parent=5 // pred_check
        _
      $region86: #{tpu_custom_call.1} parent=5 // pred_check_branch
        %603 = sbr.rel (%p600) target = $region88
      $region87: #{tpu_custom_call.1} parent=5 // pred_region
        %s604 = ssub.s32 %s33, 1
        // Predicated region
        $region89: #{tpu_custom_call.1} parent=87 // pred_check
          %p605 = pneg %p80
        $region90: #{tpu_custom_call.1} parent=87 // pred_check_branch
          %607 = sbr.rel (%p605) target = $region92
        $region91: #{tpu_custom_call.1} parent=87 // pred_region
          %608 = dma.done [#allocation3], 128
        $region92: #{tpu_custom_call.1} parent=87 // pred_fallthru
          _
        // Predicated region
        $region93: #{tpu_custom_call.1} parent=87 // pred_check
          %p609 = pneg %p101
        $region94: #{tpu_custom_call.1} parent=87 // pred_check_branch
          %611 = sbr.rel (%p609) target = $region96
        $region95: #{tpu_custom_call.1} parent=87 // pred_region
          %612 = dma.done [#allocation6], 16
        $region96: #{tpu_custom_call.1} parent=87 // pred_fallthru
          _
        // Predicated region
        $region97: #{tpu_custom_call.1} parent=87 // pred_check
          %p613 = pneg %p122
        $region98: #{tpu_custom_call.1} parent=87 // pred_check_branch
          %615 = sbr.rel (%p613) target = $region100
        $region99: #{tpu_custom_call.1} parent=87 // pred_region
          %616 = dma.done [#allocation6], 256
        $region100: #{tpu_custom_call.1} parent=87 // pred_fallthru
          _
        // Predicated region
        $region101: #{tpu_custom_call.1} parent=87 // pred_check
          %p617 = pneg %p143
        $region102: #{tpu_custom_call.1} parent=87 // pred_check_branch
          %619 = sbr.rel (%p617) target = $region104
        $region103: #{tpu_custom_call.1} parent=87 // pred_region
          %620 = dma.done [#allocation9], 16
        $region104: #{tpu_custom_call.1} parent=87 // pred_fallthru
          _
        // Predicated region
        $region105: #{tpu_custom_call.1} parent=87 // pred_check
          %p621 = pneg %p164
        $region106: #{tpu_custom_call.1} parent=87 // pred_check_branch
          %623 = sbr.rel (%p621) target = $region108
        $region107: #{tpu_custom_call.1} parent=87 // pred_region
          %624 = dma.done [#allocation9], 64
        $region108: #{tpu_custom_call.1} parent=87 // pred_fallthru
          _
        // Predicated region
        $region109: #{tpu_custom_call.1} parent=87 // pred_check
          %p625 = pneg %p185
        $region110: #{tpu_custom_call.1} parent=87 // pred_check_branch
          %627 = sbr.rel (%p625) target = $region112
        $region111: #{tpu_custom_call.1} parent=87 // pred_region
          %628 = dma.done [#allocation12], 16
        $region112: #{tpu_custom_call.1} parent=87 // pred_fallthru
          _
        // Predicated region
        $region113: #{tpu_custom_call.1} parent=87 // pred_check
          %p629 = pneg %p206
        $region114: #{tpu_custom_call.1} parent=87 // pred_check_branch
          %631 = sbr.rel (%p629) target = $region116
        $region115: #{tpu_custom_call.1} parent=87 // pred_region
          %632 = dma.done [#allocation12], 256
        $region116: #{tpu_custom_call.1} parent=87 // pred_fallthru
          _
        // Predicated region
        $region117: #{tpu_custom_call.1} parent=87 // pred_check
          %p633 = pneg %p227
        $region118: #{tpu_custom_call.1} parent=87 // pred_check_branch
          %635 = sbr.rel (%p633) target = $region120
        $region119: #{tpu_custom_call.1} parent=87 // pred_region
          %636 = dma.done [#allocation15], 16
        $region120: #{tpu_custom_call.1} parent=87 // pred_fallthru
          _
        // Predicated region
        $region121: #{tpu_custom_call.1} parent=87 // pred_check
          %p637 = pneg %p269
        $region122: #{tpu_custom_call.1} parent=87 // pred_check_branch
          %639 = sbr.rel (%p637) target = $region124
        $region123: #{tpu_custom_call.1} parent=87 // pred_region
          %640 = dma.done [#allocation15], 16
        $region124: #{tpu_custom_call.1} parent=87 // pred_fallthru
          _
        // Predicated region
        $region125: #{tpu_custom_call.1} parent=87 // pred_check
          %p641 = pneg %p290
        $region126: #{tpu_custom_call.1} parent=87 // pred_check_branch
          %643 = sbr.rel (%p641) target = $region128
        $region127: #{tpu_custom_call.1} parent=87 // pred_region
          %644 = dma.done [#allocation18], 128
        $region128: #{tpu_custom_call.1} parent=87 // pred_fallthru
          _
        // Predicated region
        $region129: #{tpu_custom_call.1} parent=87 // pred_check
          %p645 = pneg %p311
        $region130: #{tpu_custom_call.1} parent=87 // pred_check_branch
          %647 = sbr.rel (%p645) target = $region132
        $region131: #{tpu_custom_call.1} parent=87 // pred_region
          %648 = dma.done [#allocation18], 16
        $region132: #{tpu_custom_call.1} parent=87 // pred_fallthru
          _
        // Predicated region
        $region133: #{tpu_custom_call.1} parent=87 // pred_check
          %p649 = pneg %p353
        $region134: #{tpu_custom_call.1} parent=87 // pred_check_branch
          %651 = sbr.rel (%p649) target = $region136
        $region135: #{tpu_custom_call.1} parent=87 // pred_region
          %652 = dma.done [#allocation21], 16
        $region136: #{tpu_custom_call.1} parent=87 // pred_fallthru
          _
        %p653 = scmp.lt.s32.totalorder %s38, 1
        %s654 = scalar_select %p653, %s38, 1
        %s655 = smul.addr %s654, 2
        %s656 = smul.addr %s655, 8
        %s657 = scalar_lea.vmem %s0, %s656
        %p658 = pneg %p59
        %p659 = pneg %p56
        %p660 = pneg %p80
        %p661 = pneg %p77
        %p662 = pneg %p101
        %p663 = pneg %p98
        %p664 = pneg %p122
        %p665 = pneg %p119
        %p666 = pneg %p143
        %p667 = pneg %p140
        %p668 = pneg %p164
        %p669 = pneg %p161
        %p670 = pneg %p185
        %p671 = pneg %p182
        %p672 = pneg %p206
        %p673 = pneg %p203
        %p674 = pneg %p227
        %p675 = pneg %p224
        %p676 = pneg %p248
        %p677 = pneg %p245
        %p678 = pneg %p269
        %p679 = pneg %p266
        %p680 = pneg %p290
        %p681 = pneg %p287
        %p682 = pneg %p311
        %p683 = pneg %p308
        %p684 = pneg %p332
        %p685 = pneg %p329
        %p686 = pneg %p353
        %p687 = pneg %p350
        %p688 = pneg %p374
        %p689 = pneg %p371
        %p690 = pneg %p395
        %p691 = pneg %p392
        %p692 = pneg %p421
        %p693 = pneg %p418
        %s694 = sand.u32 %s408, 1
        %s695 = scalar_lea.sflag [#allocation4], %s694
        %s696 = sand.u32 %s408, 1
        %s697 = smul.addr %s696, 16
        %s698 = scalar_lea.vmem [#allocation22], %s697
        %p699 = scmp.lt.s32.totalorder %s38, 1
        %s700 = scalar_select %p699, %s38, 1
        %s701 = smul.addr %s700, 2
        %s702 = smul.addr %s701, 8
        %s703 = scalar_lea.vmem %s0, %s702
        %v704 = vlaneseq
        %v705 = vshrl.u32 %v704, 7
        %v706 = vadd.s32 %v705, 8
        %v707 = vld [vmem:[%s703] sm:$0xff]
        %v708 = vld [vmem:[%s703 + $0x8] sm:$0xff]
        %vm709 = vcmp.ge.s32.totalorder %v705, 1
        %vm710 = vcmp.ge.s32.totalorder %v706, 1
        %v711 = vrot.slane %v707, 7
        %v712 = vrot.slane %v708, 7
        %vm713 = vcmp.lt.s32.totalorder %v705, 1
        %v714 = vsel %vm713, %v711, %v712
        %v715 = vsel %vm713, %v712, %v711
        %v716 = vsel %vm709, 1, 0
        %v717 = vsel %vm710, 1, 0
        %vm718 = vcmp.eq.s32.totalorder %v716, 1
        %vm719 = vcmp.eq.s32.totalorder %v717, 1
        %v720 = vsel %vm718, %v715, 0.0
        %v721 = vsel %vm719, %v714, 0.0
        %v722 = vld [vmem:[#allocation2] sm:$0xf]
        %s723 = scalar_lea.vmem [#allocation2], 4
        %v724 = vld [vmem:[%s723] sm:$0xf]
        %vm725 = vcmask 31744
        %v727 = vsel %vm725, %v707, 0
        %v730 = vsel %vm725, %v708, 0
        %vm732 = vcmask 1043456
        %v734 = vsel %vm732, %v724, 0
        %736 = vmatprep.subr.mxu0 0.0
        %737 = vmatpush1.msra.mxu0 %v734
        %738 = vmatprep.subr.mxu0 0.0
        %739 = vmatpush1.msra.mxu0 0.0
        %740 = vmatprep.subr.mxu0 0.0
        %741 = vmatpush1.msra.mxu0 0.0
        %742 = vmatprep.subr.mxu0 0.0
        %743 = vmatpush1.msra.mxu0 0.0
        %744 = vmatprep.subr.mxu0 0.0
        %745 = vmatpush1.msra.mxu0 0.0
        %746 = vmatprep.subr.mxu0 0.0
        %747 = vmatpush1.msra.mxu0 0.0
        %748 = vmatprep.subr.mxu0 0.0
        %749 = vmatpush1.msra.mxu0 0.0
        %750 = vmatprep.subr.mxu0 0.0
        %751 = vmatpush1.msra.mxu0 0.0
        %752 = vmatprep.subr.mxu0 0.0
        %753 = vmatpush1.msra.mxu0 0.0
        %754 = vmatprep.subr.mxu0 0.0
        %755 = vmatpush1.msra.mxu0 0.0
        %756 = vmatprep.subr.mxu0 0.0
        %757 = vmatpush1.msra.mxu0 0.0
        %758 = vmatprep.subr.mxu0 0.0
        %759 = vmatpush1.msra.mxu0 0.0
        %760 = vmatprep.subr.mxu0 0.0
        %761 = vmatpush1.msra.mxu0 0.0
        %762 = vmatprep.subr.mxu0 0.0
        %763 = vmatpush1.msra.mxu0 0.0
        %764 = vmatprep.subr.mxu0 0.0
        %765 = vmatpush1.msra.mxu0 0.0
        %766 = vmatprep.subr.mxu0 0.0
        %767 = vmatpush1.msra.mxu0 0.0
        %768 = vmatprep.subr.mxu0 0.0
        %769 = vmatpush1.msra.mxu0 0.0
        %770 = vmatprep.subr.mxu0 0.0
        %771 = vmatpush1.msra.mxu0 0.0
        %772 = vmatprep.subr.mxu0 0.0
        %773 = vmatpush1.msra.mxu0 0.0
        %774 = vmatprep.subr.mxu0 0.0
        %775 = vmatpush1.msra.mxu0 0.0
        %776 = vmatprep.subr.mxu0 0.0
        %777 = vmatpush1.msra.mxu0 0.0
        %778 = vmatprep.subr.mxu0 0.0
        %779 = vmatpush1.msra.mxu0 0.0
        %780 = vmatprep.subr.mxu0 0.0
        %781 = vmatpush1.msra.mxu0 0.0
        %782 = vmatprep.subr.mxu0 0.0
        %783 = vmatpush1.msra.mxu0 0.0
        %784 = vmatprep.subr.mxu0 0.0
        %785 = vmatpush1.msra.mxu0 0.0
        %786 = vmatprep.subr.mxu0 0.0
        %787 = vmatpush1.msra.mxu0 0.0
        %788 = vmatprep.subr.mxu0 0.0
        %789 = vmatpush1.msra.mxu0 0.0
        %790 = vmatprep.subr.mxu0 0.0
        %791 = vmatpush1.msra.mxu0 0.0
        %792 = vmatprep.subr.mxu0 0.0
        %793 = vmatpush1.msra.mxu0 0.0
        %794 = vmatprep.subr.mxu0 0.0
        %795 = vmatpush1.msra.mxu0 0.0
        %796 = vmatprep.subr.mxu0 0.0
        %797 = vmatpush1.msra.mxu0 0.0
        %798 = vmatprep.subr.mxu0 0.0
        %799 = vmatpush1.msra.mxu0 0.0
        %800 = vmatprep.mubr.f32.mxu0 0.0
        %801 = vmatmul.mubr.f32.gmra.mrb[0].mxu0 %v727
        %v802 = vpop.f32.mrb[0].mxu0
        %v803 = vadd.f32 0.0, %v802
        %v804 = vpop.f32.mrb[0].mxu0
        %805 = vmatprep.mubr.f32.mxu0 0.0
        %806 = vmatmul.mubr.f32.gmra.mrb[0].mxu0 %v730
        %v807 = vpop.f32.mrb[0].mxu0
        %v808 = vadd.f32 0.0, %v807
        %v809 = vpop.f32.mrb[0].mxu0
        %810 = vdwg.mxu0
        %v812 = vsel %vm725, %v720, 0
        %v815 = vsel %vm725, %v721, 0
        %v818 = vsel %vm732, %v722, 0
        %820 = vmatprep.subr.mxu0 0.0
        %821 = vmatpush1.msra.mxu0 %v818
        %822 = vmatprep.subr.mxu0 0.0
        %823 = vmatpush1.msra.mxu0 0.0
        %824 = vmatprep.subr.mxu0 0.0
        %825 = vmatpush1.msra.mxu0 0.0
        %826 = vmatprep.subr.mxu0 0.0
        %827 = vmatpush1.msra.mxu0 0.0
        %828 = vmatprep.subr.mxu0 0.0
        %829 = vmatpush1.msra.mxu0 0.0
        %830 = vmatprep.subr.mxu0 0.0
        %831 = vmatpush1.msra.mxu0 0.0
        %832 = vmatprep.subr.mxu0 0.0
        %833 = vmatpush1.msra.mxu0 0.0
        %834 = vmatprep.subr.mxu0 0.0
        %835 = vmatpush1.msra.mxu0 0.0
        %836 = vmatprep.subr.mxu0 0.0
        %837 = vmatpush1.msra.mxu0 0.0
        %838 = vmatprep.subr.mxu0 0.0
        %839 = vmatpush1.msra.mxu0 0.0
        %840 = vmatprep.subr.mxu0 0.0
        %841 = vmatpush1.msra.mxu0 0.0
        %842 = vmatprep.subr.mxu0 0.0
        %843 = vmatpush1.msra.mxu0 0.0
        %844 = vmatprep.subr.mxu0 0.0
        %845 = vmatpush1.msra.mxu0 0.0
        %846 = vmatprep.subr.mxu0 0.0
        %847 = vmatpush1.msra.mxu0 0.0
        %848 = vmatprep.subr.mxu0 0.0
        %849 = vmatpush1.msra.mxu0 0.0
        %850 = vmatprep.subr.mxu0 0.0
        %851 = vmatpush1.msra.mxu0 0.0
        %852 = vmatprep.subr.mxu0 0.0
        %853 = vmatpush1.msra.mxu0 0.0
        %854 = vmatprep.subr.mxu0 0.0
        %855 = vmatpush1.msra.mxu0 0.0
        %856 = vmatprep.subr.mxu0 0.0
        %857 = vmatpush1.msra.mxu0 0.0
        %858 = vmatprep.subr.mxu0 0.0
        %859 = vmatpush1.msra.mxu0 0.0
        %860 = vmatprep.subr.mxu0 0.0
        %861 = vmatpush1.msra.mxu0 0.0
        %862 = vmatprep.subr.mxu0 0.0
        %863 = vmatpush1.msra.mxu0 0.0
        %864 = vmatprep.subr.mxu0 0.0
        %865 = vmatpush1.msra.mxu0 0.0
        %866 = vmatprep.subr.mxu0 0.0
        %867 = vmatpush1.msra.mxu0 0.0
        %868 = vmatprep.subr.mxu0 0.0
        %869 = vmatpush1.msra.mxu0 0.0
        %870 = vmatprep.subr.mxu0 0.0
        %871 = vmatpush1.msra.mxu0 0.0
        %872 = vmatprep.subr.mxu0 0.0
        %873 = vmatpush1.msra.mxu0 0.0
        %874 = vmatprep.subr.mxu0 0.0
        %875 = vmatpush1.msra.mxu0 0.0
        %876 = vmatprep.subr.mxu0 0.0
        %877 = vmatpush1.msra.mxu0 0.0
        %878 = vmatprep.subr.mxu0 0.0
        %879 = vmatpush1.msra.mxu0 0.0
        %880 = vmatprep.subr.mxu0 0.0
        %881 = vmatpush1.msra.mxu0 0.0
        %882 = vmatprep.subr.mxu0 0.0
        %883 = vmatpush1.msra.mxu0 0.0
        %884 = vmatprep.mubr.f32.mxu0 0.0
        %885 = vmatmul.mubr.f32.gmra.mrb[0].mxu0 %v812
        %v886 = vpop.f32.mrb[0].mxu0
        %v887 = vadd.f32 %v803, %v886
        %v888 = vpop.f32.mrb[0].mxu0
        %889 = vmatprep.mubr.f32.mxu0 0.0
        %890 = vmatmul.mubr.f32.gmra.mrb[0].mxu0 %v815
        %v891 = vpop.f32.mrb[0].mxu0
        %v892 = vadd.f32 %v808, %v891
        %v893 = vpop.f32.mrb[0].mxu0
        %894 = vdwg.mxu0
        %v895 = vld [vmem:[#allocation5] sm:$0x1]
        %v897 = vlaneseq
        %v898 = vshrl.u32 %v897, 7
        %v899 = vsub.s32 0, %v898
        %v900 = vrot.slane %v895, %v899
        %v902 = vadd.f32 %v887, %v900
        %v903 = vadd.f32 %v892, %v900
        %v904 = vmax.f32 %v902, 0.0
        %v905 = vmax.f32 %v903, 0.0
        %v906 = vrot.slane %v904, 7
        %v907 = vrot.slane %v905, 7
        %v908 = vsel %vm713, %v906, %v907
        %v909 = vsel %vm713, %v907, %v906
        %v910 = vsel %vm718, %v909, 0.0
        %v911 = vsel %vm719, %v908, 0.0
        %v912 = vld [vmem:[#allocation7] sm:$0xff]
        %s913 = scalar_lea.vmem [#allocation7], 8
        %v914 = vld [vmem:[%s913] sm:$0xff]
        %vm915 = vcmask 64512
        %v917 = vsel %vm915, %v904, 0
        %v920 = vsel %vm915, %v905, 0
        %922 = vmatprep.subr.mxu0 0.0
        %923 = vmatpush1.msra.mxu0 %v914
        %924 = vmatprep.subr.mxu0 0.0
        %925 = vmatpush1.msra.mxu0 0.0
        %926 = vmatprep.subr.mxu0 0.0
        %927 = vmatpush1.msra.mxu0 0.0
        %928 = vmatprep.subr.mxu0 0.0
        %929 = vmatpush1.msra.mxu0 0.0
        %930 = vmatprep.subr.mxu0 0.0
        %931 = vmatpush1.msra.mxu0 0.0
        %932 = vmatprep.subr.mxu0 0.0
        %933 = vmatpush1.msra.mxu0 0.0
        %934 = vmatprep.subr.mxu0 0.0
        %935 = vmatpush1.msra.mxu0 0.0
        %936 = vmatprep.subr.mxu0 0.0
        %937 = vmatpush1.msra.mxu0 0.0
        %938 = vmatprep.subr.mxu0 0.0
        %939 = vmatpush1.msra.mxu0 0.0
        %940 = vmatprep.subr.mxu0 0.0
        %941 = vmatpush1.msra.mxu0 0.0
        %942 = vmatprep.subr.mxu0 0.0
        %943 = vmatpush1.msra.mxu0 0.0
        %944 = vmatprep.subr.mxu0 0.0
        %945 = vmatpush1.msra.mxu0 0.0
        %946 = vmatprep.subr.mxu0 0.0
        %947 = vmatpush1.msra.mxu0 0.0
        %948 = vmatprep.subr.mxu0 0.0
        %949 = vmatpush1.msra.mxu0 0.0
        %950 = vmatprep.subr.mxu0 0.0
        %951 = vmatpush1.msra.mxu0 0.0
        %952 = vmatprep.subr.mxu0 0.0
        %953 = vmatpush1.msra.mxu0 0.0
        %954 = vmatprep.subr.mxu0 0.0
        %955 = vmatpush1.msra.mxu0 0.0
        %956 = vmatprep.subr.mxu0 0.0
        %957 = vmatpush1.msra.mxu0 0.0
        %958 = vmatprep.subr.mxu0 0.0
        %959 = vmatpush1.msra.mxu0 0.0
        %960 = vmatprep.subr.mxu0 0.0
        %961 = vmatpush1.msra.mxu0 0.0
        %962 = vmatprep.subr.mxu0 0.0
        %963 = vmatpush1.msra.mxu0 0.0
        %964 = vmatprep.subr.mxu0 0.0
        %965 = vmatpush1.msra.mxu0 0.0
        %966 = vmatprep.subr.mxu0 0.0
        %967 = vmatpush1.msra.mxu0 0.0
        %968 = vmatprep.subr.mxu0 0.0
        %969 = vmatpush1.msra.mxu0 0.0
        %970 = vmatprep.subr.mxu0 0.0
        %971 = vmatpush1.msra.mxu0 0.0
        %972 = vmatprep.subr.mxu0 0.0
        %973 = vmatpush1.msra.mxu0 0.0
        %974 = vmatprep.subr.mxu0 0.0
        %975 = vmatpush1.msra.mxu0 0.0
        %976 = vmatprep.subr.mxu0 0.0
        %977 = vmatpush1.msra.mxu0 0.0
        %978 = vmatprep.subr.mxu0 0.0
        %979 = vmatpush1.msra.mxu0 0.0
        %980 = vmatprep.subr.mxu0 0.0
        %981 = vmatpush1.msra.mxu0 0.0
        %982 = vmatprep.subr.mxu0 0.0
        %983 = vmatpush1.msra.mxu0 0.0
        %984 = vmatprep.subr.mxu0 0.0
        %985 = vmatpush1.msra.mxu0 0.0
        %986 = vmatprep.mubr.f32.mxu0 0.0
        %987 = vmatmul.mubr.f32.gmra.mrb[0].mxu0 %v917
        %v988 = vpop.f32.mrb[0].mxu0
        %v989 = vadd.f32 0.0, %v988
        %v990 = vpop.f32.mrb[0].mxu0
        %991 = vmatprep.mubr.f32.mxu0 0.0
        %992 = vmatmul.mubr.f32.gmra.mrb[0].mxu0 %v920
        %v993 = vpop.f32.mrb[0].mxu0
        %v994 = vadd.f32 0.0, %v993
        %v995 = vpop.f32.mrb[0].mxu0
        %996 = vdwg.mxu0
        %v998 = vsel %vm915, %v910, 0
        %v1001 = vsel %vm915, %v911, 0
        %1003 = vmatprep.subr.mxu0 0.0
        %1004 = vmatpush1.msra.mxu0 %v912
        %1005 = vmatprep.subr.mxu0 0.0
        %1006 = vmatpush1.msra.mxu0 0.0
        %1007 = vmatprep.subr.mxu0 0.0
        %1008 = vmatpush1.msra.mxu0 0.0
        %1009 = vmatprep.subr.mxu0 0.0
        %1010 = vmatpush1.msra.mxu0 0.0
        %1011 = vmatprep.subr.mxu0 0.0
        %1012 = vmatpush1.msra.mxu0 0.0
        %1013 = vmatprep.subr.mxu0 0.0
        %1014 = vmatpush1.msra.mxu0 0.0
        %1015 = vmatprep.subr.mxu0 0.0
        %1016 = vmatpush1.msra.mxu0 0.0
        %1017 = vmatprep.subr.mxu0 0.0
        %1018 = vmatpush1.msra.mxu0 0.0
        %1019 = vmatprep.subr.mxu0 0.0
        %1020 = vmatpush1.msra.mxu0 0.0
        %1021 = vmatprep.subr.mxu0 0.0
        %1022 = vmatpush1.msra.mxu0 0.0
        %1023 = vmatprep.subr.mxu0 0.0
        %1024 = vmatpush1.msra.mxu0 0.0
        %1025 = vmatprep.subr.mxu0 0.0
        %1026 = vmatpush1.msra.mxu0 0.0
        %1027 = vmatprep.subr.mxu0 0.0
        %1028 = vmatpush1.msra.mxu0 0.0
        %1029 = vmatprep.subr.mxu0 0.0
        %1030 = vmatpush1.msra.mxu0 0.0
        %1031 = vmatprep.subr.mxu0 0.0
        %1032 = vmatpush1.msra.mxu0 0.0
        %1033 = vmatprep.subr.mxu0 0.0
        %1034 = vmatpush1.msra.mxu0 0.0
        %1035 = vmatprep.subr.mxu0 0.0
        %1036 = vmatpush1.msra.mxu0 0.0
        %1037 = vmatprep.subr.mxu0 0.0
        %1038 = vmatpush1.msra.mxu0 0.0
        %1039 = vmatprep.subr.mxu0 0.0
        %1040 = vmatpush1.msra.mxu0 0.0
        %1041 = vmatprep.subr.mxu0 0.0
        %1042 = vmatpush1.msra.mxu0 0.0
        %1043 = vmatprep.subr.mxu0 0.0
        %1044 = vmatpush1.msra.mxu0 0.0
        %1045 = vmatprep.subr.mxu0 0.0
        %1046 = vmatpush1.msra.mxu0 0.0
        %1047 = vmatprep.subr.mxu0 0.0
        %1048 = vmatpush1.msra.mxu0 0.0
        %1049 = vmatprep.subr.mxu0 0.0
        %1050 = vmatpush1.msra.mxu0 0.0
        %1051 = vmatprep.subr.mxu0 0.0
        %1052 = vmatpush1.msra.mxu0 0.0
        %1053 = vmatprep.subr.mxu0 0.0
        %1054 = vmatpush1.msra.mxu0 0.0
        %1055 = vmatprep.subr.mxu0 0.0
        %1056 = vmatpush1.msra.mxu0 0.0
        %1057 = vmatprep.subr.mxu0 0.0
        %1058 = vmatpush1.msra.mxu0 0.0
        %1059 = vmatprep.subr.mxu0 0.0
        %1060 = vmatpush1.msra.mxu0 0.0
        %1061 = vmatprep.subr.mxu0 0.0
        %1062 = vmatpush1.msra.mxu0 0.0
        %1063 = vmatprep.subr.mxu0 0.0
        %1064 = vmatpush1.msra.mxu0 0.0
        %1065 = vmatprep.subr.mxu0 0.0
        %1066 = vmatpush1.msra.mxu0 0.0
        %1067 = vmatprep.mubr.f32.mxu0 0.0
        %1068 = vmatmul.mubr.f32.gmra.mrb[0].mxu0 %v998
        %v1069 = vpop.f32.mrb[0].mxu0
        %v1070 = vadd.f32 %v989, %v1069
        %v1071 = vpop.f32.mrb[0].mxu0
        %1072 = vmatprep.mubr.f32.mxu0 0.0
        %1073 = vmatmul.mubr.f32.gmra.mrb[0].mxu0 %v1001
        %v1074 = vpop.f32.mrb[0].mxu0
        %v1075 = vadd.f32 %v994, %v1074
        %v1076 = vpop.f32.mrb[0].mxu0
        %1077 = vdwg.mxu0
        %v1078 = vld [vmem:[#allocation8] sm:$0x1]
        %v1080 = vlaneseq
        %v1081 = vshrl.u32 %v1080, 7
        %v1082 = vsub.s32 0, %v1081
        %v1083 = vrot.slane %v1078, %v1082
        %v1085 = vadd.f32 %v1070, %v1083
        %v1086 = vadd.f32 %v1075, %v1083
        %v1087 = vmax.f32 %v1085, 0.0
        %v1088 = vmax.f32 %v1086, 0.0
        %v1089 = vld [vmem:[#allocation10] sm:$0xf]
        %v1090 = vld [vmem:[#allocation11] sm:$0x1]
        %v1092 = vlaneseq
        %v1093 = vshrl.u32 %v1092, 7
        %v1094 = vsub.s32 0, %v1093
        %v1095 = vrot.slane %v1090, %v1094
        %v1098 = vsel %vm732, %v1089, 0
        %1100 = vmatprep.subr.mxu0 0.0
        %1101 = vmatpush1.msra.mxu0 %v1098
        %1102 = vmatprep.subr.mxu0 0.0
        %1103 = vmatpush1.msra.mxu0 0.0
        %1104 = vmatprep.subr.mxu0 0.0
        %1105 = vmatpush1.msra.mxu0 0.0
        %1106 = vmatprep.subr.mxu0 0.0
        %1107 = vmatpush1.msra.mxu0 0.0
        %1108 = vmatprep.subr.mxu0 0.0
        %1109 = vmatpush1.msra.mxu0 0.0
        %1110 = vmatprep.subr.mxu0 0.0
        %1111 = vmatpush1.msra.mxu0 0.0
        %1112 = vmatprep.subr.mxu0 0.0
        %1113 = vmatpush1.msra.mxu0 0.0
        %1114 = vmatprep.subr.mxu0 0.0
        %1115 = vmatpush1.msra.mxu0 0.0
        %1116 = vmatprep.subr.mxu0 0.0
        %1117 = vmatpush1.msra.mxu0 0.0
        %1118 = vmatprep.subr.mxu0 0.0
        %1119 = vmatpush1.msra.mxu0 0.0
        %1120 = vmatprep.subr.mxu0 0.0
        %1121 = vmatpush1.msra.mxu0 0.0
        %1122 = vmatprep.subr.mxu0 0.0
        %1123 = vmatpush1.msra.mxu0 0.0
        %1124 = vmatprep.subr.mxu0 0.0
        %1125 = vmatpush1.msra.mxu0 0.0
        %1126 = vmatprep.subr.mxu0 0.0
        %1127 = vmatpush1.msra.mxu0 0.0
        %1128 = vmatprep.subr.mxu0 0.0
        %1129 = vmatpush1.msra.mxu0 0.0
        %1130 = vmatprep.subr.mxu0 0.0
        %1131 = vmatpush1.msra.mxu0 0.0
        %1132 = vmatprep.subr.mxu0 0.0
        %1133 = vmatpush1.msra.mxu0 0.0
        %1134 = vmatprep.subr.mxu0 0.0
        %1135 = vmatpush1.msra.mxu0 0.0
        %1136 = vmatprep.subr.mxu0 0.0
        %1137 = vmatpush1.msra.mxu0 0.0
        %1138 = vmatprep.subr.mxu0 0.0
        %1139 = vmatpush1.msra.mxu0 0.0
        %1140 = vmatprep.subr.mxu0 0.0
        %1141 = vmatpush1.msra.mxu0 0.0
        %1142 = vmatprep.subr.mxu0 0.0
        %1143 = vmatpush1.msra.mxu0 0.0
        %1144 = vmatprep.subr.mxu0 0.0
        %1145 = vmatpush1.msra.mxu0 0.0
        %1146 = vmatprep.subr.mxu0 0.0
        %1147 = vmatpush1.msra.mxu0 0.0
        %1148 = vmatprep.subr.mxu0 0.0
        %1149 = vmatpush1.msra.mxu0 0.0
        %1150 = vmatprep.subr.mxu0 0.0
        %1151 = vmatpush1.msra.mxu0 0.0
        %1152 = vmatprep.subr.mxu0 0.0
        %1153 = vmatpush1.msra.mxu0 0.0
        %1154 = vmatprep.subr.mxu0 0.0
        %1155 = vmatpush1.msra.mxu0 0.0
        %1156 = vmatprep.subr.mxu0 0.0
        %1157 = vmatpush1.msra.mxu0 0.0
        %1158 = vmatprep.subr.mxu0 0.0
        %1159 = vmatpush1.msra.mxu0 0.0
        %1160 = vmatprep.subr.mxu0 0.0
        %1161 = vmatpush1.msra.mxu0 0.0
        %1162 = vmatprep.subr.mxu0 0.0
        %1163 = vmatpush1.msra.mxu0 0.0
        %1164 = vmatprep.mubr.f32.mxu0 0.0
        %1165 = vmatmul.mubr.f32.gmra.mrb[0].mxu0 %v727
        %v1166 = vpop.f32.mrb[0].mxu0
        %v1167 = vadd.f32 %v1095, %v1166
        %v1168 = vpop.f32.mrb[0].mxu0
        %1169 = vmatprep.mubr.f32.mxu0 0.0
        %1170 = vmatmul.mubr.f32.gmra.mrb[0].mxu0 %v730
        %v1171 = vpop.f32.mrb[0].mxu0
        %v1172 = vadd.f32 %v1095, %v1171
        %v1173 = vpop.f32.mrb[0].mxu0
        %1174 = vdwg.mxu0
        %v1175 = vadd.f32 %v1087, %v1167
        %v1176 = vadd.f32 %v1088, %v1172
        %v1177 = vmax.f32 %v1175, 0.0
        %v1178 = vmax.f32 %v1176, 0.0
        %vm1179 = vcmp.ge.s32.totalorder %v705, 2
        %vm1180 = vcmp.ge.s32.totalorder %v706, 2
        %v1181 = vrot.slane %v1177, 6
        %v1182 = vrot.slane %v1178, 6
        %vm1183 = vcmp.lt.s32.totalorder %v705, 2
        %v1184 = vsel %vm1183, %v1181, %v1182
        %v1185 = vsel %vm1183, %v1182, %v1181
        %v1186 = vsel %vm1179, 1, 0
        %v1187 = vsel %vm1180, 1, 0
        %vm1188 = vcmp.eq.s32.totalorder %v1186, 1
        %vm1189 = vcmp.eq.s32.totalorder %v1187, 1
        %v1190 = vsel %vm1188, %v1185, 0.0
        %v1191 = vsel %vm1189, %v1184, 0.0
        %v1192 = vld [vmem:[#allocation13] sm:$0xff]
        %s1193 = scalar_lea.vmem [#allocation13], 8
        %v1194 = vld [vmem:[%s1193] sm:$0xff]
        %v1196 = vsel %vm915, %v1177, 0
        %v1199 = vsel %vm915, %v1178, 0
        %1201 = vmatprep.subr.mxu0 0.0
        %1202 = vmatpush1.msra.mxu0 %v1194
        %1203 = vmatprep.subr.mxu0 0.0
        %1204 = vmatpush1.msra.mxu0 0.0
        %1205 = vmatprep.subr.mxu0 0.0
        %1206 = vmatpush1.msra.mxu0 0.0
        %1207 = vmatprep.subr.mxu0 0.0
        %1208 = vmatpush1.msra.mxu0 0.0
        %1209 = vmatprep.subr.mxu0 0.0
        %1210 = vmatpush1.msra.mxu0 0.0
        %1211 = vmatprep.subr.mxu0 0.0
        %1212 = vmatpush1.msra.mxu0 0.0
        %1213 = vmatprep.subr.mxu0 0.0
        %1214 = vmatpush1.msra.mxu0 0.0
        %1215 = vmatprep.subr.mxu0 0.0
        %1216 = vmatpush1.msra.mxu0 0.0
        %1217 = vmatprep.subr.mxu0 0.0
        %1218 = vmatpush1.msra.mxu0 0.0
        %1219 = vmatprep.subr.mxu0 0.0
        %1220 = vmatpush1.msra.mxu0 0.0
        %1221 = vmatprep.subr.mxu0 0.0
        %1222 = vmatpush1.msra.mxu0 0.0
        %1223 = vmatprep.subr.mxu0 0.0
        %1224 = vmatpush1.msra.mxu0 0.0
        %1225 = vmatprep.subr.mxu0 0.0
        %1226 = vmatpush1.msra.mxu0 0.0
        %1227 = vmatprep.subr.mxu0 0.0
        %1228 = vmatpush1.msra.mxu0 0.0
        %1229 = vmatprep.subr.mxu0 0.0
        %1230 = vmatpush1.msra.mxu0 0.0
        %1231 = vmatprep.subr.mxu0 0.0
        %1232 = vmatpush1.msra.mxu0 0.0
        %1233 = vmatprep.subr.mxu0 0.0
        %1234 = vmatpush1.msra.mxu0 0.0
        %1235 = vmatprep.subr.mxu0 0.0
        %1236 = vmatpush1.msra.mxu0 0.0
        %1237 = vmatprep.subr.mxu0 0.0
        %1238 = vmatpush1.msra.mxu0 0.0
        %1239 = vmatprep.subr.mxu0 0.0
        %1240 = vmatpush1.msra.mxu0 0.0
        %1241 = vmatprep.subr.mxu0 0.0
        %1242 = vmatpush1.msra.mxu0 0.0
        %1243 = vmatprep.subr.mxu0 0.0
        %1244 = vmatpush1.msra.mxu0 0.0
        %1245 = vmatprep.subr.mxu0 0.0
        %1246 = vmatpush1.msra.mxu0 0.0
        %1247 = vmatprep.subr.mxu0 0.0
        %1248 = vmatpush1.msra.mxu0 0.0
        %1249 = vmatprep.subr.mxu0 0.0
        %1250 = vmatpush1.msra.mxu0 0.0
        %1251 = vmatprep.subr.mxu0 0.0
        %1252 = vmatpush1.msra.mxu0 0.0
        %1253 = vmatprep.subr.mxu0 0.0
        %1254 = vmatpush1.msra.mxu0 0.0
        %1255 = vmatprep.subr.mxu0 0.0
        %1256 = vmatpush1.msra.mxu0 0.0
        %1257 = vmatprep.subr.mxu0 0.0
        %1258 = vmatpush1.msra.mxu0 0.0
        %1259 = vmatprep.subr.mxu0 0.0
        %1260 = vmatpush1.msra.mxu0 0.0
        %1261 = vmatprep.subr.mxu0 0.0
        %1262 = vmatpush1.msra.mxu0 0.0
        %1263 = vmatprep.subr.mxu0 0.0
        %1264 = vmatpush1.msra.mxu0 0.0
        %1265 = vmatprep.mubr.f32.mxu0 0.0
        %1266 = vmatmul.mubr.f32.gmra.mrb[0].mxu0 %v1196
        %v1267 = vpop.f32.mrb[0].mxu0
        %v1268 = vadd.f32 0.0, %v1267
        %v1269 = vpop.f32.mrb[0].mxu0
        %1270 = vmatprep.mubr.f32.mxu0 0.0
        %1271 = vmatmul.mubr.f32.gmra.mrb[0].mxu0 %v1199
        %v1272 = vpop.f32.mrb[0].mxu0
        %v1273 = vadd.f32 0.0, %v1272
        %v1274 = vpop.f32.mrb[0].mxu0
        %1275 = vdwg.mxu0
        %v1277 = vsel %vm915, %v1190, 0
        %v1280 = vsel %vm915, %v1191, 0
        %1282 = vmatprep.subr.mxu0 0.0
        %1283 = vmatpush1.msra.mxu0 %v1192
        %1284 = vmatprep.subr.mxu0 0.0
        %1285 = vmatpush1.msra.mxu0 0.0
        %1286 = vmatprep.subr.mxu0 0.0
        %1287 = vmatpush1.msra.mxu0 0.0
        %1288 = vmatprep.subr.mxu0 0.0
        %1289 = vmatpush1.msra.mxu0 0.0
        %1290 = vmatprep.subr.mxu0 0.0
        %1291 = vmatpush1.msra.mxu0 0.0
        %1292 = vmatprep.subr.mxu0 0.0
        %1293 = vmatpush1.msra.mxu0 0.0
        %1294 = vmatprep.subr.mxu0 0.0
        %1295 = vmatpush1.msra.mxu0 0.0
        %1296 = vmatprep.subr.mxu0 0.0
        %1297 = vmatpush1.msra.mxu0 0.0
        %1298 = vmatprep.subr.mxu0 0.0
        %1299 = vmatpush1.msra.mxu0 0.0
        %1300 = vmatprep.subr.mxu0 0.0
        %1301 = vmatpush1.msra.mxu0 0.0
        %1302 = vmatprep.subr.mxu0 0.0
        %1303 = vmatpush1.msra.mxu0 0.0
        %1304 = vmatprep.subr.mxu0 0.0
        %1305 = vmatpush1.msra.mxu0 0.0
        %1306 = vmatprep.subr.mxu0 0.0
        %1307 = vmatpush1.msra.mxu0 0.0
        %1308 = vmatprep.subr.mxu0 0.0
        %1309 = vmatpush1.msra.mxu0 0.0
        %1310 = vmatprep.subr.mxu0 0.0
        %1311 = vmatpush1.msra.mxu0 0.0
        %1312 = vmatprep.subr.mxu0 0.0
        %1313 = vmatpush1.msra.mxu0 0.0
        %1314 = vmatprep.subr.mxu0 0.0
        %1315 = vmatpush1.msra.mxu0 0.0
        %1316 = vmatprep.subr.mxu0 0.0
        %1317 = vmatpush1.msra.mxu0 0.0
        %1318 = vmatprep.subr.mxu0 0.0
        %1319 = vmatpush1.msra.mxu0 0.0
        %1320 = vmatprep.subr.mxu0 0.0
        %1321 = vmatpush1.msra.mxu0 0.0
        %1322 = vmatprep.subr.mxu0 0.0
        %1323 = vmatpush1.msra.mxu0 0.0
        %1324 = vmatprep.subr.mxu0 0.0
        %1325 = vmatpush1.msra.mxu0 0.0
        %1326 = vmatprep.subr.mxu0 0.0
        %1327 = vmatpush1.msra.mxu0 0.0
        %1328 = vmatprep.subr.mxu0 0.0
        %1329 = vmatpush1.msra.mxu0 0.0
        %1330 = vmatprep.subr.mxu0 0.0
        %1331 = vmatpush1.msra.mxu0 0.0
        %1332 = vmatprep.subr.mxu0 0.0
        %1333 = vmatpush1.msra.mxu0 0.0
        %1334 = vmatprep.subr.mxu0 0.0
        %1335 = vmatpush1.msra.mxu0 0.0
        %1336 = vmatprep.subr.mxu0 0.0
        %1337 = vmatpush1.msra.mxu0 0.0
        %1338 = vmatprep.subr.mxu0 0.0
        %1339 = vmatpush1.msra.mxu0 0.0
        %1340 = vmatprep.subr.mxu0 0.0
        %1341 = vmatpush1.msra.mxu0 0.0
        %1342 = vmatprep.subr.mxu0 0.0
        %1343 = vmatpush1.msra.mxu0 0.0
        %1344 = vmatprep.subr.mxu0 0.0
        %1345 = vmatpush1.msra.mxu0 0.0
        %1346 = vmatprep.mubr.f32.mxu0 0.0
        %1347 = vmatmul.mubr.f32.gmra.mrb[0].mxu0 %v1277
        %v1348 = vpop.f32.mrb[0].mxu0
        %v1349 = vadd.f32 %v1268, %v1348
        %v1350 = vpop.f32.mrb[0].mxu0
        %1351 = vmatprep.mubr.f32.mxu0 0.0
        %1352 = vmatmul.mubr.f32.gmra.mrb[0].mxu0 %v1280
        %v1353 = vpop.f32.mrb[0].mxu0
        %v1354 = vadd.f32 %v1273, %v1353
        %v1355 = vpop.f32.mrb[0].mxu0
        %1356 = vdwg.mxu0
        %v1357 = vld [vmem:[#allocation14] sm:$0x1]
        %v1359 = vlaneseq
        %v1360 = vshrl.u32 %v1359, 7
        %v1361 = vsub.s32 0, %v1360
        %v1362 = vrot.slane %v1357, %v1361
        %v1364 = vadd.f32 %v1349, %v1362
        %v1365 = vadd.f32 %v1354, %v1362
        %v1366 = vmax.f32 %v1364, 0.0
        %v1367 = vmax.f32 %v1365, 0.0
        %v1368 = vrot.slane %v1366, 6
        %v1369 = vrot.slane %v1367, 6
        %v1370 = vsel %vm1183, %v1368, %v1369
        %v1371 = vsel %vm1183, %v1369, %v1368
        %v1372 = vsel %vm1188, %v1371, 0.0
        %v1373 = vsel %vm1189, %v1370, 0.0
        %v1374 = vld [vmem:[%s9] sm:$0xff]
        %v1375 = vld [vmem:[%s9 + $0x8] sm:$0xff]
        %s1376 = scalar_lea.vmem %s9, 16
        %v1377 = vld [vmem:[%s1376] sm:$0xff]
        %v1378 = vld [vmem:[%s1376 + $0x8] sm:$0xff]
        %vm1379 = vcmask 130048
        %v1381 = vsel %vm1379, %v1366, 0
        %v1384 = vsel %vm1379, %v1367, 0
        %1386 = vmatprep.subr.mxu0 0.0
        %1387 = vmatpush1.msra.mxu0 %v1377
        %1388 = vmatprep.subr.mxu0 0.0
        %1389 = vmatpush1.msra.mxu0 %v1378
        %1390 = vmatprep.subr.mxu0 0.0
        %1391 = vmatpush1.msra.mxu0 0.0
        %1392 = vmatprep.subr.mxu0 0.0
        %1393 = vmatpush1.msra.mxu0 0.0
        %1394 = vmatprep.subr.mxu0 0.0
        %1395 = vmatpush1.msra.mxu0 0.0
        %1396 = vmatprep.subr.mxu0 0.0
        %1397 = vmatpush1.msra.mxu0 0.0
        %1398 = vmatprep.subr.mxu0 0.0
        %1399 = vmatpush1.msra.mxu0 0.0
        %1400 = vmatprep.subr.mxu0 0.0
        %1401 = vmatpush1.msra.mxu0 0.0
        %1402 = vmatprep.subr.mxu0 0.0
        %1403 = vmatpush1.msra.mxu0 0.0
        %1404 = vmatprep.subr.mxu0 0.0
        %1405 = vmatpush1.msra.mxu0 0.0
        %1406 = vmatprep.subr.mxu0 0.0
        %1407 = vmatpush1.msra.mxu0 0.0
        %1408 = vmatprep.subr.mxu0 0.0
        %1409 = vmatpush1.msra.mxu0 0.0
        %1410 = vmatprep.subr.mxu0 0.0
        %1411 = vmatpush1.msra.mxu0 0.0
        %1412 = vmatprep.subr.mxu0 0.0
        %1413 = vmatpush1.msra.mxu0 0.0
        %1414 = vmatprep.subr.mxu0 0.0
        %1415 = vmatpush1.msra.mxu0 0.0
        %1416 = vmatprep.subr.mxu0 0.0
        %1417 = vmatpush1.msra.mxu0 0.0
        %1418 = vmatprep.subr.mxu0 0.0
        %1419 = vmatpush1.msra.mxu0 0.0
        %1420 = vmatprep.subr.mxu0 0.0
        %1421 = vmatpush1.msra.mxu0 0.0
        %1422 = vmatprep.subr.mxu0 0.0
        %1423 = vmatpush1.msra.mxu0 0.0
        %1424 = vmatprep.subr.mxu0 0.0
        %1425 = vmatpush1.msra.mxu0 0.0
        %1426 = vmatprep.subr.mxu0 0.0
        %1427 = vmatpush1.msra.mxu0 0.0
        %1428 = vmatprep.subr.mxu0 0.0
        %1429 = vmatpush1.msra.mxu0 0.0
        %1430 = vmatprep.subr.mxu0 0.0
        %1431 = vmatpush1.msra.mxu0 0.0
        %1432 = vmatprep.subr.mxu0 0.0
        %1433 = vmatpush1.msra.mxu0 0.0
        %1434 = vmatprep.subr.mxu0 0.0
        %1435 = vmatpush1.msra.mxu0 0.0
        %1436 = vmatprep.subr.mxu0 0.0
        %1437 = vmatpush1.msra.mxu0 0.0
        %1438 = vmatprep.subr.mxu0 0.0
        %1439 = vmatpush1.msra.mxu0 0.0
        %1440 = vmatprep.subr.mxu0 0.0
        %1441 = vmatpush1.msra.mxu0 0.0
        %1442 = vmatprep.subr.mxu0 0.0
        %1443 = vmatpush1.msra.mxu0 0.0
        %1444 = vmatprep.subr.mxu0 0.0
        %1445 = vmatpush1.msra.mxu0 0.0
        %1446 = vmatprep.subr.mxu0 0.0
        %1447 = vmatpush1.msra.mxu0 0.0
        %1448 = vmatprep.subr.mxu0 0.0
        %1449 = vmatpush1.msra.mxu0 0.0
        %1450 = vmatprep.mubr.f32.mxu0 0.0
        %1451 = vmatmul.mubr.f32.gmra.mrb[0].mxu0 %v1381
        %v1452 = vpop.f32.mrb[0].mxu0
        %v1453 = vadd.f32 0.0, %v1452
        %v1454 = vpop.f32.mrb[0].mxu0
        %1455 = vmatprep.mubr.f32.mxu0 0.0
        %1456 = vmatmul.mubr.f32.gmra.mrb[0].mxu0 %v1384
        %v1457 = vpop.f32.mrb[0].mxu0
        %v1458 = vadd.f32 0.0, %v1457
        %v1459 = vpop.f32.mrb[0].mxu0
        %1460 = vdwg.mxu0
        %v1462 = vsel %vm1379, %v1372, 0
        %v1465 = vsel %vm1379, %v1373, 0
        %1467 = vmatprep.subr.mxu0 0.0
        %1468 = vmatpush1.msra.mxu0 %v1374
        %1469 = vmatprep.subr.mxu0 0.0
        %1470 = vmatpush1.msra.mxu0 %v1375
        %1471 = vmatprep.subr.mxu0 0.0
        %1472 = vmatpush1.msra.mxu0 0.0
        %1473 = vmatprep.subr.mxu0 0.0
        %1474 = vmatpush1.msra.mxu0 0.0
        %1475 = vmatprep.subr.mxu0 0.0
        %1476 = vmatpush1.msra.mxu0 0.0
        %1477 = vmatprep.subr.mxu0 0.0
        %1478 = vmatpush1.msra.mxu0 0.0
        %1479 = vmatprep.subr.mxu0 0.0
        %1480 = vmatpush1.msra.mxu0 0.0
        %1481 = vmatprep.subr.mxu0 0.0
        %1482 = vmatpush1.msra.mxu0 0.0
        %1483 = vmatprep.subr.mxu0 0.0
        %1484 = vmatpush1.msra.mxu0 0.0
        %1485 = vmatprep.subr.mxu0 0.0
        %1486 = vmatpush1.msra.mxu0 0.0
        %1487 = vmatprep.subr.mxu0 0.0
        %1488 = vmatpush1.msra.mxu0 0.0
        %1489 = vmatprep.subr.mxu0 0.0
        %1490 = vmatpush1.msra.mxu0 0.0
        %1491 = vmatprep.subr.mxu0 0.0
        %1492 = vmatpush1.msra.mxu0 0.0
        %1493 = vmatprep.subr.mxu0 0.0
        %1494 = vmatpush1.msra.mxu0 0.0
        %1495 = vmatprep.subr.mxu0 0.0
        %1496 = vmatpush1.msra.mxu0 0.0
        %1497 = vmatprep.subr.mxu0 0.0
        %1498 = vmatpush1.msra.mxu0 0.0
        %1499 = vmatprep.subr.mxu0 0.0
        %1500 = vmatpush1.msra.mxu0 0.0
        %1501 = vmatprep.subr.mxu0 0.0
        %1502 = vmatpush1.msra.mxu0 0.0
        %1503 = vmatprep.subr.mxu0 0.0
        %1504 = vmatpush1.msra.mxu0 0.0
        %1505 = vmatprep.subr.mxu0 0.0
        %1506 = vmatpush1.msra.mxu0 0.0
        %1507 = vmatprep.subr.mxu0 0.0
        %1508 = vmatpush1.msra.mxu0 0.0
        %1509 = vmatprep.subr.mxu0 0.0
        %1510 = vmatpush1.msra.mxu0 0.0
        %1511 = vmatprep.subr.mxu0 0.0
        %1512 = vmatpush1.msra.mxu0 0.0
        %1513 = vmatprep.subr.mxu0 0.0
        %1514 = vmatpush1.msra.mxu0 0.0
        %1515 = vmatprep.subr.mxu0 0.0
        %1516 = vmatpush1.msra.mxu0 0.0
        %1517 = vmatprep.subr.mxu0 0.0
        %1518 = vmatpush1.msra.mxu0 0.0
        %1519 = vmatprep.subr.mxu0 0.0
        %1520 = vmatpush1.msra.mxu0 0.0
        %1521 = vmatprep.subr.mxu0 0.0
        %1522 = vmatpush1.msra.mxu0 0.0
        %1523 = vmatprep.subr.mxu0 0.0
        %1524 = vmatpush1.msra.mxu0 0.0
        %1525 = vmatprep.subr.mxu0 0.0
        %1526 = vmatpush1.msra.mxu0 0.0
        %1527 = vmatprep.subr.mxu0 0.0
        %1528 = vmatpush1.msra.mxu0 0.0
        %1529 = vmatprep.subr.mxu0 0.0
        %1530 = vmatpush1.msra.mxu0 0.0
        %1531 = vmatprep.mubr.f32.mxu0 0.0
        %1532 = vmatmul.mubr.f32.gmra.mrb[0].mxu0 %v1462
        %v1533 = vpop.f32.mrb[0].mxu0
        %v1534 = vadd.f32 %v1453, %v1533
        %v1535 = vpop.f32.mrb[0].mxu0
        %1536 = vmatprep.mubr.f32.mxu0 0.0
        %1537 = vmatmul.mubr.f32.gmra.mrb[0].mxu0 %v1465
        %v1538 = vpop.f32.mrb[0].mxu0
        %v1539 = vadd.f32 %v1458, %v1538
        %v1540 = vpop.f32.mrb[0].mxu0
        %1541 = vdwg.mxu0
        %v1542 = vld [vmem:[#allocation16] sm:$0x1]
        %v1544 = vlaneseq
        %v1545 = vshrl.u32 %v1544, 7
        %v1546 = vsub.s32 0, %v1545
        %v1547 = vrot.slane %v1542, %v1546
        %v1549 = vadd.f32 %v1534, %v1547
        %v1550 = vadd.f32 %v1539, %v1547
        %v1551 = vmax.f32 %v1549, 0.0
        %v1552 = vmax.f32 %v1550, 0.0
        %v1553 = vld [vmem:[#allocation17] sm:$0xff]
        %v1554 = vld [vmem:[#allocation19] sm:$0x1]
        %v1556 = vlaneseq
        %v1557 = vshrl.u32 %v1556, 7
        %v1558 = vsub.s32 0, %v1557
        %v1559 = vrot.slane %v1554, %v1558
        %1561 = vmatprep.subr.mxu0 0.0
        %1562 = vmatpush1.msra.mxu0 %v1553
        %1563 = vmatprep.subr.mxu0 0.0
        %1564 = vmatpush1.msra.mxu0 0.0
        %1565 = vmatprep.subr.mxu0 0.0
        %1566 = vmatpush1.msra.mxu0 0.0
        %1567 = vmatprep.subr.mxu0 0.0
        %1568 = vmatpush1.msra.mxu0 0.0
        %1569 = vmatprep.subr.mxu0 0.0
        %1570 = vmatpush1.msra.mxu0 0.0
        %1571 = vmatprep.subr.mxu0 0.0
        %1572 = vmatpush1.msra.mxu0 0.0
        %1573 = vmatprep.subr.mxu0 0.0
        %1574 = vmatpush1.msra.mxu0 0.0
        %1575 = vmatprep.subr.mxu0 0.0
        %1576 = vmatpush1.msra.mxu0 0.0
        %1577 = vmatprep.subr.mxu0 0.0
        %1578 = vmatpush1.msra.mxu0 0.0
        %1579 = vmatprep.subr.mxu0 0.0
        %1580 = vmatpush1.msra.mxu0 0.0
        %1581 = vmatprep.subr.mxu0 0.0
        %1582 = vmatpush1.msra.mxu0 0.0
        %1583 = vmatprep.subr.mxu0 0.0
        %1584 = vmatpush1.msra.mxu0 0.0
        %1585 = vmatprep.subr.mxu0 0.0
        %1586 = vmatpush1.msra.mxu0 0.0
        %1587 = vmatprep.subr.mxu0 0.0
        %1588 = vmatpush1.msra.mxu0 0.0
        %1589 = vmatprep.subr.mxu0 0.0
        %1590 = vmatpush1.msra.mxu0 0.0
        %1591 = vmatprep.subr.mxu0 0.0
        %1592 = vmatpush1.msra.mxu0 0.0
        %1593 = vmatprep.subr.mxu0 0.0
        %1594 = vmatpush1.msra.mxu0 0.0
        %1595 = vmatprep.subr.mxu0 0.0
        %1596 = vmatpush1.msra.mxu0 0.0
        %1597 = vmatprep.subr.mxu0 0.0
        %1598 = vmatpush1.msra.mxu0 0.0
        %1599 = vmatprep.subr.mxu0 0.0
        %1600 = vmatpush1.msra.mxu0 0.0
        %1601 = vmatprep.subr.mxu0 0.0
        %1602 = vmatpush1.msra.mxu0 0.0
        %1603 = vmatprep.subr.mxu0 0.0
        %1604 = vmatpush1.msra.mxu0 0.0
        %1605 = vmatprep.subr.mxu0 0.0
        %1606 = vmatpush1.msra.mxu0 0.0
        %1607 = vmatprep.subr.mxu0 0.0
        %1608 = vmatpush1.msra.mxu0 0.0
        %1609 = vmatprep.subr.mxu0 0.0
        %1610 = vmatpush1.msra.mxu0 0.0
        %1611 = vmatprep.subr.mxu0 0.0
        %1612 = vmatpush1.msra.mxu0 0.0
        %1613 = vmatprep.subr.mxu0 0.0
        %1614 = vmatpush1.msra.mxu0 0.0
        %1615 = vmatprep.subr.mxu0 0.0
        %1616 = vmatpush1.msra.mxu0 0.0
        %1617 = vmatprep.subr.mxu0 0.0
        %1618 = vmatpush1.msra.mxu0 0.0
        %1619 = vmatprep.subr.mxu0 0.0
        %1620 = vmatpush1.msra.mxu0 0.0
        %1621 = vmatprep.subr.mxu0 0.0
        %1622 = vmatpush1.msra.mxu0 0.0
        %1623 = vmatprep.subr.mxu0 0.0
        %1624 = vmatpush1.msra.mxu0 0.0
        %1625 = vmatprep.mubr.f32.mxu0 0.0
        %1626 = vmatmul.mubr.f32.gmra.mrb[0].mxu0 %v1196
        %v1627 = vpop.f32.mrb[0].mxu0
        %v1628 = vadd.f32 %v1559, %v1627
        %v1629 = vpop.f32.mrb[0].mxu0
        %1630 = vmatprep.mubr.f32.mxu0 0.0
        %1631 = vmatmul.mubr.f32.gmra.mrb[0].mxu0 %v1199
        %v1632 = vpop.f32.mrb[0].mxu0
        %v1633 = vadd.f32 %v1559, %v1632
        %v1634 = vpop.f32.mrb[0].mxu0
        %1635 = vdwg.mxu0
        %v1636 = vadd.f32 %v1551, %v1628
        %v1637 = vadd.f32 %v1552, %v1633
        %v1638 = vmax.f32 %v1636, 0.0
        %v1639 = vmax.f32 %v1637, 0.0
        %vm1640 = vcmp.ge.s32.totalorder %v705, 4
        %vm1641 = vcmp.ge.s32.totalorder %v706, 4
        %v1642 = vrot.slane %v1638, 4
        %v1643 = vrot.slane %v1639, 4
        %vm1644 = vcmp.lt.s32.totalorder %v705, 4
        %v1645 = vsel %vm1644, %v1642, %v1643
        %v1646 = vsel %vm1644, %v1643, %v1642
        %v1647 = vsel %vm1640, 1, 0
        %v1648 = vsel %vm1641, 1, 0
        %vm1649 = vcmp.eq.s32.totalorder %v1647, 1
        %vm1650 = vcmp.eq.s32.totalorder %v1648, 1
        %v1651 = vsel %vm1649, %v1646, 0.0
        %v1652 = vsel %vm1650, %v1645, 0.0
        %v1653 = vld [vmem:[%s13] sm:$0xff]
        %v1654 = vld [vmem:[%s13 + $0x8] sm:$0xff]
        %s1655 = scalar_lea.vmem %s13, 16
        %v1656 = vld [vmem:[%s1655] sm:$0xff]
        %v1657 = vld [vmem:[%s1655 + $0x8] sm:$0xff]
        %v1659 = vsel %vm1379, %v1638, 0
        %v1662 = vsel %vm1379, %v1639, 0
        %1664 = vmatprep.subr.mxu0 0.0
        %1665 = vmatpush1.msra.mxu0 %v1656
        %1666 = vmatprep.subr.mxu0 0.0
        %1667 = vmatpush1.msra.mxu0 %v1657
        %1668 = vmatprep.subr.mxu0 0.0
        %1669 = vmatpush1.msra.mxu0 0.0
        %1670 = vmatprep.subr.mxu0 0.0
        %1671 = vmatpush1.msra.mxu0 0.0
        %1672 = vmatprep.subr.mxu0 0.0
        %1673 = vmatpush1.msra.mxu0 0.0
        %1674 = vmatprep.subr.mxu0 0.0
        %1675 = vmatpush1.msra.mxu0 0.0
        %1676 = vmatprep.subr.mxu0 0.0
        %1677 = vmatpush1.msra.mxu0 0.0
        %1678 = vmatprep.subr.mxu0 0.0
        %1679 = vmatpush1.msra.mxu0 0.0
        %1680 = vmatprep.subr.mxu0 0.0
        %1681 = vmatpush1.msra.mxu0 0.0
        %1682 = vmatprep.subr.mxu0 0.0
        %1683 = vmatpush1.msra.mxu0 0.0
        %1684 = vmatprep.subr.mxu0 0.0
        %1685 = vmatpush1.msra.mxu0 0.0
        %1686 = vmatprep.subr.mxu0 0.0
        %1687 = vmatpush1.msra.mxu0 0.0
        %1688 = vmatprep.subr.mxu0 0.0
        %1689 = vmatpush1.msra.mxu0 0.0
        %1690 = vmatprep.subr.mxu0 0.0
        %1691 = vmatpush1.msra.mxu0 0.0
        %1692 = vmatprep.subr.mxu0 0.0
        %1693 = vmatpush1.msra.mxu0 0.0
        %1694 = vmatprep.subr.mxu0 0.0
        %1695 = vmatpush1.msra.mxu0 0.0
        %1696 = vmatprep.subr.mxu0 0.0
        %1697 = vmatpush1.msra.mxu0 0.0
        %1698 = vmatprep.subr.mxu0 0.0
        %1699 = vmatpush1.msra.mxu0 0.0
        %1700 = vmatprep.subr.mxu0 0.0
        %1701 = vmatpush1.msra.mxu0 0.0
        %1702 = vmatprep.subr.mxu0 0.0
        %1703 = vmatpush1.msra.mxu0 0.0
        %1704 = vmatprep.subr.mxu0 0.0
        %1705 = vmatpush1.msra.mxu0 0.0
        %1706 = vmatprep.subr.mxu0 0.0
        %1707 = vmatpush1.msra.mxu0 0.0
        %1708 = vmatprep.subr.mxu0 0.0
        %1709 = vmatpush1.msra.mxu0 0.0
        %1710 = vmatprep.subr.mxu0 0.0
        %1711 = vmatpush1.msra.mxu0 0.0
        %1712 = vmatprep.subr.mxu0 0.0
        %1713 = vmatpush1.msra.mxu0 0.0
        %1714 = vmatprep.subr.mxu0 0.0
        %1715 = vmatpush1.msra.mxu0 0.0
        %1716 = vmatprep.subr.mxu0 0.0
        %1717 = vmatpush1.msra.mxu0 0.0
        %1718 = vmatprep.subr.mxu0 0.0
        %1719 = vmatpush1.msra.mxu0 0.0
        %1720 = vmatprep.subr.mxu0 0.0
        %1721 = vmatpush1.msra.mxu0 0.0
        %1722 = vmatprep.subr.mxu0 0.0
        %1723 = vmatpush1.msra.mxu0 0.0
        %1724 = vmatprep.subr.mxu0 0.0
        %1725 = vmatpush1.msra.mxu0 0.0
        %1726 = vmatprep.subr.mxu0 0.0
        %1727 = vmatpush1.msra.mxu0 0.0
        %1728 = vmatprep.mubr.f32.mxu0 0.0
        %1729 = vmatmul.mubr.f32.gmra.mrb[0].mxu0 %v1659
        %v1730 = vpop.f32.mrb[0].mxu0
        %v1731 = vadd.f32 0.0, %v1730
        %v1732 = vpop.f32.mrb[0].mxu0
        %1733 = vmatprep.mubr.f32.mxu0 0.0
        %1734 = vmatmul.mubr.f32.gmra.mrb[0].mxu0 %v1662
        %v1735 = vpop.f32.mrb[0].mxu0
        %v1736 = vadd.f32 0.0, %v1735
        %v1737 = vpop.f32.mrb[0].mxu0
        %1738 = vdwg.mxu0
        %v1740 = vsel %vm1379, %v1651, 0
        %v1743 = vsel %vm1379, %v1652, 0
        %1745 = vmatprep.subr.mxu0 0.0
        %1746 = vmatpush1.msra.mxu0 %v1653
        %1747 = vmatprep.subr.mxu0 0.0
        %1748 = vmatpush1.msra.mxu0 %v1654
        %1749 = vmatprep.subr.mxu0 0.0
        %1750 = vmatpush1.msra.mxu0 0.0
        %1751 = vmatprep.subr.mxu0 0.0
        %1752 = vmatpush1.msra.mxu0 0.0
        %1753 = vmatprep.subr.mxu0 0.0
        %1754 = vmatpush1.msra.mxu0 0.0
        %1755 = vmatprep.subr.mxu0 0.0
        %1756 = vmatpush1.msra.mxu0 0.0
        %1757 = vmatprep.subr.mxu0 0.0
        %1758 = vmatpush1.msra.mxu0 0.0
        %1759 = vmatprep.subr.mxu0 0.0
        %1760 = vmatpush1.msra.mxu0 0.0
        %1761 = vmatprep.subr.mxu0 0.0
        %1762 = vmatpush1.msra.mxu0 0.0
        %1763 = vmatprep.subr.mxu0 0.0
        %1764 = vmatpush1.msra.mxu0 0.0
        %1765 = vmatprep.subr.mxu0 0.0
        %1766 = vmatpush1.msra.mxu0 0.0
        %1767 = vmatprep.subr.mxu0 0.0
        %1768 = vmatpush1.msra.mxu0 0.0
        %1769 = vmatprep.subr.mxu0 0.0
        %1770 = vmatpush1.msra.mxu0 0.0
        %1771 = vmatprep.subr.mxu0 0.0
        %1772 = vmatpush1.msra.mxu0 0.0
        %1773 = vmatprep.subr.mxu0 0.0
        %1774 = vmatpush1.msra.mxu0 0.0
        %1775 = vmatprep.subr.mxu0 0.0
        %1776 = vmatpush1.msra.mxu0 0.0
        %1777 = vmatprep.subr.mxu0 0.0
        %1778 = vmatpush1.msra.mxu0 0.0
        %1779 = vmatprep.subr.mxu0 0.0
        %1780 = vmatpush1.msra.mxu0 0.0
        %1781 = vmatprep.subr.mxu0 0.0
        %1782 = vmatpush1.msra.mxu0 0.0
        %1783 = vmatprep.subr.mxu0 0.0
        %1784 = vmatpush1.msra.mxu0 0.0
        %1785 = vmatprep.subr.mxu0 0.0
        %1786 = vmatpush1.msra.mxu0 0.0
        %1787 = vmatprep.subr.mxu0 0.0
        %1788 = vmatpush1.msra.mxu0 0.0
        %1789 = vmatprep.subr.mxu0 0.0
        %1790 = vmatpush1.msra.mxu0 0.0
        %1791 = vmatprep.subr.mxu0 0.0
        %1792 = vmatpush1.msra.mxu0 0.0
        %1793 = vmatprep.subr.mxu0 0.0
        %1794 = vmatpush1.msra.mxu0 0.0
        %1795 = vmatprep.subr.mxu0 0.0
        %1796 = vmatpush1.msra.mxu0 0.0
        %1797 = vmatprep.subr.mxu0 0.0
        %1798 = vmatpush1.msra.mxu0 0.0
        %1799 = vmatprep.subr.mxu0 0.0
        %1800 = vmatpush1.msra.mxu0 0.0
        %1801 = vmatprep.subr.mxu0 0.0
        %1802 = vmatpush1.msra.mxu0 0.0
        %1803 = vmatprep.subr.mxu0 0.0
        %1804 = vmatpush1.msra.mxu0 0.0
        %1805 = vmatprep.subr.mxu0 0.0
        %1806 = vmatpush1.msra.mxu0 0.0
        %1807 = vmatprep.subr.mxu0 0.0
        %1808 = vmatpush1.msra.mxu0 0.0
        %1809 = vmatprep.mubr.f32.mxu0 0.0
        %1810 = vmatmul.mubr.f32.gmra.mrb[0].mxu0 %v1740
        %v1811 = vpop.f32.mrb[0].mxu0
        %v1812 = vadd.f32 %v1731, %v1811
        %v1813 = vpop.f32.mrb[0].mxu0
        %1814 = vmatprep.mubr.f32.mxu0 0.0
        %1815 = vmatmul.mubr.f32.gmra.mrb[0].mxu0 %v1743
        %v1816 = vpop.f32.mrb[0].mxu0
        %v1817 = vadd.f32 %v1736, %v1816
        %v1818 = vpop.f32.mrb[0].mxu0
        %1819 = vdwg.mxu0
        %v1820 = vld [vmem:[#allocation20] sm:$0x1]
        %v1822 = vlaneseq
        %v1823 = vshrl.u32 %v1822, 7
        %v1824 = vsub.s32 0, %v1823
        %v1825 = vrot.slane %v1820, %v1824
        %v1827 = vadd.f32 %v1812, %v1825
        %v1828 = vadd.f32 %v1817, %v1825
        %v1829 = vmax.f32 %v1827, 0.0
        %v1830 = vmax.f32 %v1828, 0.0
        %v1831 = vrot.slane %v1829, 4
        %v1832 = vrot.slane %v1830, 4
        %v1833 = vsel %vm1644, %v1831, %v1832
        %v1834 = vsel %vm1644, %v1832, %v1831
        %v1835 = vsel %vm1649, %v1834, 0.0
        %v1836 = vsel %vm1650, %v1833, 0.0
        %v1837 = vld [vmem:[%s15] sm:$0xff]
        %v1838 = vld [vmem:[%s15 + $0x8] sm:$0xff]
        %s1839 = scalar_lea.vmem %s15, 16
        %v1840 = vld [vmem:[%s1839] sm:$0xff]
        %v1841 = vld [vmem:[%s1839 + $0x8] sm:$0xff]
        %v1843 = vsel %vm1379, %v1829, 0
        %v1846 = vsel %vm1379, %v1830, 0
        %1848 = vmatprep.subr.mxu0 0.0
        %1849 = vmatpush1.msra.mxu0 %v1840
        %1850 = vmatprep.subr.mxu0 0.0
        %1851 = vmatpush1.msra.mxu0 %v1841
        %1852 = vmatprep.subr.mxu0 0.0
        %1853 = vmatpush1.msra.mxu0 0.0
        %1854 = vmatprep.subr.mxu0 0.0
        %1855 = vmatpush1.msra.mxu0 0.0
        %1856 = vmatprep.subr.mxu0 0.0
        %1857 = vmatpush1.msra.mxu0 0.0
        %1858 = vmatprep.subr.mxu0 0.0
        %1859 = vmatpush1.msra.mxu0 0.0
        %1860 = vmatprep.subr.mxu0 0.0
        %1861 = vmatpush1.msra.mxu0 0.0
        %1862 = vmatprep.subr.mxu0 0.0
        %1863 = vmatpush1.msra.mxu0 0.0
        %1864 = vmatprep.subr.mxu0 0.0
        %1865 = vmatpush1.msra.mxu0 0.0
        %1866 = vmatprep.subr.mxu0 0.0
        %1867 = vmatpush1.msra.mxu0 0.0
        %1868 = vmatprep.subr.mxu0 0.0
        %1869 = vmatpush1.msra.mxu0 0.0
        %1870 = vmatprep.subr.mxu0 0.0
        %1871 = vmatpush1.msra.mxu0 0.0
        %1872 = vmatprep.subr.mxu0 0.0
        %1873 = vmatpush1.msra.mxu0 0.0
        %1874 = vmatprep.subr.mxu0 0.0
        %1875 = vmatpush1.msra.mxu0 0.0
        %1876 = vmatprep.subr.mxu0 0.0
        %1877 = vmatpush1.msra.mxu0 0.0
        %1878 = vmatprep.subr.mxu0 0.0
        %1879 = vmatpush1.msra.mxu0 0.0
        %1880 = vmatprep.subr.mxu0 0.0
        %1881 = vmatpush1.msra.mxu0 0.0
        %1882 = vmatprep.subr.mxu0 0.0
        %1883 = vmatpush1.msra.mxu0 0.0
        %1884 = vmatprep.subr.mxu0 0.0
        %1885 = vmatpush1.msra.mxu0 0.0
        %1886 = vmatprep.subr.mxu0 0.0
        %1887 = vmatpush1.msra.mxu0 0.0
        %1888 = vmatprep.subr.mxu0 0.0
        %1889 = vmatpush1.msra.mxu0 0.0
        %1890 = vmatprep.subr.mxu0 0.0
        %1891 = vmatpush1.msra.mxu0 0.0
        %1892 = vmatprep.subr.mxu0 0.0
        %1893 = vmatpush1.msra.mxu0 0.0
        %1894 = vmatprep.subr.mxu0 0.0
        %1895 = vmatpush1.msra.mxu0 0.0
        %1896 = vmatprep.subr.mxu0 0.0
        %1897 = vmatpush1.msra.mxu0 0.0
        %1898 = vmatprep.subr.mxu0 0.0
        %1899 = vmatpush1.msra.mxu0 0.0
        %1900 = vmatprep.subr.mxu0 0.0
        %1901 = vmatpush1.msra.mxu0 0.0
        %1902 = vmatprep.subr.mxu0 0.0
        %1903 = vmatpush1.msra.mxu0 0.0
        %1904 = vmatprep.subr.mxu0 0.0
        %1905 = vmatpush1.msra.mxu0 0.0
        %1906 = vmatprep.subr.mxu0 0.0
        %1907 = vmatpush1.msra.mxu0 0.0
        %1908 = vmatprep.subr.mxu0 0.0
        %1909 = vmatpush1.msra.mxu0 0.0
        %1910 = vmatprep.subr.mxu0 0.0
        %1911 = vmatpush1.msra.mxu0 0.0
        %1912 = vmatprep.mubr.f32.mxu0 0.0
        %1913 = vmatmul.mubr.f32.gmra.mrb[0].mxu0 %v1843
        %v1914 = vpop.f32.mrb[0].mxu0
        %v1915 = vadd.f32 0.0, %v1914
        %v1916 = vpop.f32.mrb[0].mxu0
        %1917 = vmatprep.mubr.f32.mxu0 0.0
        %1918 = vmatmul.mubr.f32.gmra.mrb[0].mxu0 %v1846
        %v1919 = vpop.f32.mrb[0].mxu0
        %v1920 = vadd.f32 0.0, %v1919
        %v1921 = vpop.f32.mrb[0].mxu0
        %1922 = vdwg.mxu0
        %v1924 = vsel %vm1379, %v1835, 0
        %v1927 = vsel %vm1379, %v1836, 0
        %1929 = vmatprep.subr.mxu0 0.0
        %1930 = vmatpush1.msra.mxu0 %v1837
        %1931 = vmatprep.subr.mxu0 0.0
        %1932 = vmatpush1.msra.mxu0 %v1838
        %1933 = vmatprep.subr.mxu0 0.0
        %1934 = vmatpush1.msra.mxu0 0.0
        %1935 = vmatprep.subr.mxu0 0.0
        %1936 = vmatpush1.msra.mxu0 0.0
        %1937 = vmatprep.subr.mxu0 0.0
        %1938 = vmatpush1.msra.mxu0 0.0
        %1939 = vmatprep.subr.mxu0 0.0
        %1940 = vmatpush1.msra.mxu0 0.0
        %1941 = vmatprep.subr.mxu0 0.0
        %1942 = vmatpush1.msra.mxu0 0.0
        %1943 = vmatprep.subr.mxu0 0.0
        %1944 = vmatpush1.msra.mxu0 0.0
        %1945 = vmatprep.subr.mxu0 0.0
        %1946 = vmatpush1.msra.mxu0 0.0
        %1947 = vmatprep.subr.mxu0 0.0
        %1948 = vmatpush1.msra.mxu0 0.0
        %1949 = vmatprep.subr.mxu0 0.0
        %1950 = vmatpush1.msra.mxu0 0.0
        %1951 = vmatprep.subr.mxu0 0.0
        %1952 = vmatpush1.msra.mxu0 0.0
        %1953 = vmatprep.subr.mxu0 0.0
        %1954 = vmatpush1.msra.mxu0 0.0
        %1955 = vmatprep.subr.mxu0 0.0
        %1956 = vmatpush1.msra.mxu0 0.0
        %1957 = vmatprep.subr.mxu0 0.0
        %1958 = vmatpush1.msra.mxu0 0.0
        %1959 = vmatprep.subr.mxu0 0.0
        %1960 = vmatpush1.msra.mxu0 0.0
        %1961 = vmatprep.subr.mxu0 0.0
        %1962 = vmatpush1.msra.mxu0 0.0
        %1963 = vmatprep.subr.mxu0 0.0
        %1964 = vmatpush1.msra.mxu0 0.0
        %1965 = vmatprep.subr.mxu0 0.0
        %1966 = vmatpush1.msra.mxu0 0.0
        %1967 = vmatprep.subr.mxu0 0.0
        %1968 = vmatpush1.msra.mxu0 0.0
        %1969 = vmatprep.subr.mxu0 0.0
        %1970 = vmatpush1.msra.mxu0 0.0
        %1971 = vmatprep.subr.mxu0 0.0
        %1972 = vmatpush1.msra.mxu0 0.0
        %1973 = vmatprep.subr.mxu0 0.0
        %1974 = vmatpush1.msra.mxu0 0.0
        %1975 = vmatprep.subr.mxu0 0.0
        %1976 = vmatpush1.msra.mxu0 0.0
        %1977 = vmatprep.subr.mxu0 0.0
        %1978 = vmatpush1.msra.mxu0 0.0
        %1979 = vmatprep.subr.mxu0 0.0
        %1980 = vmatpush1.msra.mxu0 0.0
        %1981 = vmatprep.subr.mxu0 0.0
        %1982 = vmatpush1.msra.mxu0 0.0
        %1983 = vmatprep.subr.mxu0 0.0
        %1984 = vmatpush1.msra.mxu0 0.0
        %1985 = vmatprep.subr.mxu0 0.0
        %1986 = vmatpush1.msra.mxu0 0.0
        %1987 = vmatprep.subr.mxu0 0.0
        %1988 = vmatpush1.msra.mxu0 0.0
        %1989 = vmatprep.subr.mxu0 0.0
        %1990 = vmatpush1.msra.mxu0 0.0
        %1991 = vmatprep.subr.mxu0 0.0
        %1992 = vmatpush1.msra.mxu0 0.0
        %1993 = vmatprep.mubr.f32.mxu0 0.0
        %1994 = vmatmul.mubr.f32.gmra.mrb[0].mxu0 %v1924
        %v1995 = vpop.f32.mrb[0].mxu0
        %v1996 = vadd.f32 %v1915, %v1995
        %v1997 = vpop.f32.mrb[0].mxu0
        %1998 = vmatprep.mubr.f32.mxu0 0.0
        %1999 = vmatmul.mubr.f32.gmra.mrb[0].mxu0 %v1927
        %v2000 = vpop.f32.mrb[0].mxu0
        %v2001 = vadd.f32 %v1920, %v2000
        %v2002 = vpop.f32.mrb[0].mxu0
        %2003 = vdwg.mxu0
        %v2004 = vld [vmem:[%s16] sm:$0x1]
        %v2006 = vlaneseq
        %v2007 = vshrl.u32 %v2006, 7
        %v2008 = vsub.s32 0, %v2007
        %v2009 = vrot.slane %v2004, %v2008
        %v2011 = vadd.f32 %v1996, %v2009
        %v2012 = vadd.f32 %v2001, %v2009
        %v2013 = vmax.f32 %v2011, 0.0
        %v2014 = vmax.f32 %v2012, 0.0
        %v2015 = vadd.f32 %v2013, %v1638
        %v2016 = vadd.f32 %v2014, %v1639
        %v2017 = vmax.f32 %v2015, 0.0
        %v2018 = vmax.f32 %v2016, 0.0
        %2019 = vst.msk [vmem:[%s698] sm:$0xff] %vm1379, %v2017
        %2020 = vst.msk [vmem:[%s698 + $0x8] sm:$0xff] %vm1379, %v2018
        %s2021 = sand.u32 %s408, 1
        %s2022 = scalar_lea.sflag [#allocation4], %s2021
        %s2023 = sand.u32 %s408, 1
        %s2024 = smul.addr %s2023, 16
        %s2025 = scalar_lea.vmem [#allocation22], %s2024
        // Predicated region
        $region137: #{tpu_custom_call.1} parent=87 // pred_check
          %p2026 = pneg %p418
        $region138: #{tpu_custom_call.1} parent=87 // pred_check_branch
          %2028 = sbr.rel (%p2026) target = $region140
        $region139: #{tpu_custom_call.1} parent=87 // pred_region
          %s2030 = ssub.s32 256, 256
          %2031 = vsyncadd %s2022, %s2030
          %s2032 = smul.addr %s38, 2
          %s2033 = smul.addr %s2032, 128
          %s2034 = scalar_lea.hbm %s17, %s2033
          %s2035 = sshll.u32 %s2025, 4
          %s2036 = int_to_ptr.vmem [resolvable:$true] %s2035
          %2041 = dma.vmem_to_hbm [thread:$0]  %s2036, 256, %s2034, %s2022, 128, 128, 8
        $region140: #{tpu_custom_call.1} parent=87 // pred_fallthru
          _
      $region88: #{tpu_custom_call.1} parent=5 // pred_fallthru
        _
      %p2042 = scmp.le.s32.totalorder 2, %s33
      // Predicated region
      $region141: #{tpu_custom_call.1} parent=5 // pred_check
        %p2043 = pneg %p2042
      $region142: #{tpu_custom_call.1} parent=5 // pred_check_branch
        %2045 = sbr.rel (%p2043) target = $region144
      $region143: #{tpu_custom_call.1} parent=5 // pred_region
        %s2046 = ssub.s32 %s33, 2
        // Predicated region
        $region145: #{tpu_custom_call.1} parent=143 // pred_check
          %p2047 = pneg %p424
        $region146: #{tpu_custom_call.1} parent=143 // pred_check_branch
          %2049 = sbr.rel (%p2047) target = $region148
        $region147: #{tpu_custom_call.1} parent=143 // pred_region
          %s2050 = sand.u32 %s409, 1
          %s2051 = scalar_lea.sflag [#allocation4], %s2050
          %s2052 = sand.u32 %s409, 1
          %s2053 = smul.addr %s2052, 16
          %s2054 = scalar_lea.vmem [#allocation22], %s2053
          %2055 = dma.done %s2051, 256
        $region148: #{tpu_custom_call.1} parent=143 // pred_fallthru
          _
      $region144: #{tpu_custom_call.1} parent=5 // pred_fallthru
        _
    $region6: #{tpu_custom_call.1} parent=1 // loop_footer
      %s37 = sadd.s32 1, %s33
    $region7: #{tpu_custom_call.1} parent=1 // loop_footer_branch
      %32 = sbr.rel target = $region3
    $region8: #{tpu_custom_call.1} parent=1 // loop_exit
      _
    %2056 = vsyncpa [#allocation3], 1
    %s2057 = scalar_lea.sflag [#allocation3], 1
    %2058 = vsyncpa %s2057, 1
    %2059 = vsyncpa [#allocation6], 1
    %2060 = vsyncpa [#allocation9], 1
    %2061 = vsyncpa [#allocation12], 1
    %2062 = vsyncpa [#allocation15], 1
    %2063 = vsyncpa [#allocation18], 1
    %2064 = vsyncpa [#allocation21], 1
    %2065 = vsyncpa [#allocation4], 1
    %s2066 = scalar_lea.sflag [#allocation4], 1
    %2067 = vsyncpa %s2066, 1

</llo_original>
